<compile_context>
chip_gen: v6e
topology: v6e:2x2x1
jax: 0.10.0
libtpu: 0.0.40
codegen_flags: <defaults>
</compile_context>

<pallas_src>
import functools

import jax
import jax.numpy as jnp
from jax.experimental import pallas as pl
from jax.experimental.pallas import tpu as pltpu

INPUT_DIMS = 784
HIDDEN_DIMS = 128
OUTPUT_DIMS = 10
PADDED_OUT = 128        # lane-dense output width (>= OUTPUT_DIMS, multiple of 128)
DEFAULT_TILE_B = 512    # batch rows per grid step


def _round_up(x, m):
    return (x + m - 1) // m * m


def mlp_kernel(*refs):
    """refs = (x_ref, w1, b1, ..., w8, b8, out_ref).

    x_ref:   (TILE_B, 784)  bf16 VMEM tile (pipelined over the batch grid)
    w_i:     (in, out)      bf16, resident in VMEM (constant index_map)
    b_i:     (1, out)       f32
    out_ref: (TILE_B, 128)  f32 (lane-dense; real logits are columns [:10])
    """
    x_ref = refs[0]
    out_ref = refs[-1]
    param_refs = refs[1:-1]
    n_layers = len(param_refs) // 2

    h = x_ref[...]  # bf16
    for i in range(n_layers):
        w = param_refs[2 * i][...]        # bf16 (in, out)
        b = param_refs[2 * i + 1][...]    # f32  (1, out)
        if h.dtype != jnp.bfloat16:
            h = h.astype(jnp.bfloat16)
        z = jnp.dot(h, w, preferred_element_type=jnp.float32) + b  # f32
        if i < n_layers - 1:
            # nn.Sigmoid() as a single EUP op: sig(z) = 0.5*(tanh(z/2)+1).
            h = 0.5 * (jnp.tanh(0.5 * z) + 1.0)
            # GradientNormalizationLayer(): identity in the forward pass.
        else:
            h = z  # final nn.Linear has no activation
    out_ref[...] = h


@functools.partial(jax.jit, static_argnames=("tile_b",))
def mlp_forward(x, packed_params, tile_b=DEFAULT_TILE_B):
    """x: any shape with leading batch dim; flattened to (B, INPUT_DIMS).

    packed_params: list of (w_bf16, b_f32) with the last layer zero-padded to
    PADDED_OUT output columns (see pack_params).
    """
    b = x.shape[0]
    x_flat = x.reshape(b, -1).astype(jnp.bfloat16)   # halve HBM read traffic
    assert x_flat.shape[1] == INPUT_DIMS

    # Batch tiling: small batches run as one (8-aligned) tile; large batches
    # are pipelined over the grid with TILE_B rows per step.
    eff_tile = min(tile_b, _round_up(b, 8))
    b_pad = _round_up(b, eff_tile)
    if b_pad != b:
        x_flat = jnp.pad(x_flat, ((0, b_pad - b), (0, 0)))

    flat_args = [x_flat]
    in_specs = [pl.BlockSpec((eff_tile, INPUT_DIMS), lambda i: (i, 0))]
    for w, bias in packed_params:
        flat_args.append(w)
        flat_args.append(bias)
        # Constant index_map -> weights/biases DMA'd once, stay VMEM-resident.
        in_specs.append(pl.BlockSpec(w.shape, lambda i: (0, 0)))
        in_specs.append(pl.BlockSpec(bias.shape, lambda i: (0, 0)))

    out = pl.pallas_call(
        mlp_kernel,
        grid=(b_pad // eff_tile,),
        out_shape=jax.ShapeDtypeStruct((b_pad, PADDED_OUT), jnp.float32),
        in_specs=in_specs,
        out_specs=pl.BlockSpec((eff_tile, PADDED_OUT), lambda i: (i, 0)),
        compiler_params=pltpu.CompilerParams(
            dimension_semantics=("parallel",)),
    )(*flat_args)
    return out[:b, :OUTPUT_DIMS]


def init_params(key):
    """Deterministic init matching the PyTorch module:
    weight ~ N(0, 0.05), bias = 0. Weights stored as (in, out), f32."""
    dims = [INPUT_DIMS] + [HIDDEN_DIMS] * 7 + [OUTPUT_DIMS]
    params = []
    for i in range(len(dims) - 1):
        key, sub = jax.random.split(key)
        w = 0.05 * jax.random.normal(sub, (dims[i], dims[i + 1]),
                                     dtype=jnp.float32)
        bias = jnp.zeros((1, dims[i + 1]), dtype=jnp.float32)
        params.append((w, bias))
    return params


def pack_params(params):
    """Cast weights to bf16 and zero-pad the final layer to PADDED_OUT lanes
    so the kernel's output block is lane-dense (128-wide)."""
    packed = []
    n = len(params)
    for i, (w, bias) in enumerate(params):
        if i == n - 1 and w.shape[1] < PADDED_OUT:
            pad = PADDED_OUT - w.shape[1]
            w = jnp.pad(w, ((0, 0), (0, pad)))
            bias = jnp.pad(bias, ((0, 0), (0, pad)))
        packed.append((w.astype(jnp.bfloat16), bias.astype(jnp.float32)))
    return packed


def mlp_reference(x, params):
    """Pure-JAX f32 reference matching the PyTorch forward semantics."""
    h = x.reshape(x.shape[0], -1).astype(jnp.float32)
    for i, (w, bias) in enumerate(params):
        z = h @ w + bias
        h = jax.nn.sigmoid(z) if i < len(params) - 1 else z
    return h


if __name__ == "__main__":
    key = jax.random.PRNGKey(0)
    pkey, xkey = jax.random.split(key)

    params = init_params(pkey)
    packed = pack_params(params)

    # MNIST-style input: batch=8, 1x28x28 -> flattens to 784.
    x = jax.random.normal(xkey, (8, 1, 28, 28), dtype=jnp.float32)

    out = mlp_forward(x, packed)
    out = jax.block_until_ready(out)

    ref = mlp_reference(x, params)
    assert out.shape == (8, OUTPUT_DIMS), out.shape
    # Tolerance loosened for bf16 inputs/weights on the MXU + tanh-form sigmoid.
    assert jnp.allclose(out, ref, atol=3e-2, rtol=3e-2), (
        float(jnp.max(jnp.abs(out - ref)))
    )
    print("KERNEL_OK")
</pallas_src>

<mosaic_0001>
module attributes {stable_mosaic.version = 11 : i64} {
  func.func @mlp_kernel(%arg0: i32, %arg1: memref<8x784xbf16, #tpu.memory_space<vmem>>, %arg2: memref<784x128xbf16, #tpu.memory_space<vmem>>, %arg3: memref<1x128xf32, #tpu.memory_space<vmem>>, %arg4: memref<128x128xbf16, #tpu.memory_space<vmem>>, %arg5: memref<1x128xf32, #tpu.memory_space<vmem>>, %arg6: memref<128x128xbf16, #tpu.memory_space<vmem>>, %arg7: memref<1x128xf32, #tpu.memory_space<vmem>>, %arg8: memref<128x128xbf16, #tpu.memory_space<vmem>>, %arg9: memref<1x128xf32, #tpu.memory_space<vmem>>, %arg10: memref<128x128xbf16, #tpu.memory_space<vmem>>, %arg11: memref<1x128xf32, #tpu.memory_space<vmem>>, %arg12: memref<128x128xbf16, #tpu.memory_space<vmem>>, %arg13: memref<1x128xf32, #tpu.memory_space<vmem>>, %arg14: memref<128x128xbf16, #tpu.memory_space<vmem>>, %arg15: memref<1x128xf32, #tpu.memory_space<vmem>>, %arg16: memref<128x128xbf16, #tpu.memory_space<vmem>>, %arg17: memref<1x128xf32, #tpu.memory_space<vmem>>, %arg18: memref<8x128xf32, #tpu.memory_space<vmem>>) attributes {dimension_semantics = [#tpu.dimension_semantics<parallel>], iteration_bounds = array<i64: 1>, scalar_prefetch = 0 : i64, scratch_operands = 0 : i64, tpu.core_type = #tpu.core_type<tc>, window_params = [{transform_indices = @transform_0, window_bounds = array<i64: 8, 784>}, {pipeline_mode = #tpu.pipeline_mode<synchronous>, transform_indices = @transform_1, window_bounds = array<i64: 784, 128>}, {pipeline_mode = #tpu.pipeline_mode<synchronous>, transform_indices = @transform_2, window_bounds = array<i64: 1, 128>}, {pipeline_mode = #tpu.pipeline_mode<synchronous>, transform_indices = @transform_3, window_bounds = array<i64: 128, 128>}, {pipeline_mode = #tpu.pipeline_mode<synchronous>, transform_indices = @transform_4, window_bounds = array<i64: 1, 128>}, {pipeline_mode = #tpu.pipeline_mode<synchronous>, transform_indices = @transform_5, window_bounds = array<i64: 128, 128>}, {pipeline_mode = #tpu.pipeline_mode<synchronous>, transform_indices = @transform_6, window_bounds = array<i64: 1, 128>}, {pipeline_mode = #tpu.pipeline_mode<synchronous>, transform_indices = @transform_7, window_bounds = array<i64: 128, 128>}, {pipeline_mode = #tpu.pipeline_mode<synchronous>, transform_indices = @transform_8, window_bounds = array<i64: 1, 128>}, {pipeline_mode = #tpu.pipeline_mode<synchronous>, transform_indices = @transform_9, window_bounds = array<i64: 128, 128>}, {pipeline_mode = #tpu.pipeline_mode<synchronous>, transform_indices = @transform_10, window_bounds = array<i64: 1, 128>}, {pipeline_mode = #tpu.pipeline_mode<synchronous>, transform_indices = @transform_11, window_bounds = array<i64: 128, 128>}, {pipeline_mode = #tpu.pipeline_mode<synchronous>, transform_indices = @transform_12, window_bounds = array<i64: 1, 128>}, {pipeline_mode = #tpu.pipeline_mode<synchronous>, transform_indices = @transform_13, window_bounds = array<i64: 128, 128>}, {pipeline_mode = #tpu.pipeline_mode<synchronous>, transform_indices = @transform_14, window_bounds = array<i64: 1, 128>}, {pipeline_mode = #tpu.pipeline_mode<synchronous>, transform_indices = @transform_15, window_bounds = array<i64: 128, 128>}, {pipeline_mode = #tpu.pipeline_mode<synchronous>, transform_indices = @transform_16, window_bounds = array<i64: 1, 128>}, {transform_indices = @transform_17, window_bounds = array<i64: 8, 128>}]} {
    %c0 = arith.constant 0 : index
    %c0_0 = arith.constant 0 : index
    %0 = vector.load %arg1[%c0, %c0_0] : memref<8x784xbf16, #tpu.memory_space<vmem>>, vector<8x784xbf16>
    %c0_1 = arith.constant 0 : index
    %c0_2 = arith.constant 0 : index
    %1 = vector.load %arg2[%c0_1, %c0_2] : memref<784x128xbf16, #tpu.memory_space<vmem>>, vector<784x128xbf16>
    %c0_3 = arith.constant 0 : index
    %c0_4 = arith.constant 0 : index
    %2 = vector.load %arg3[%c0_3, %c0_4] : memref<1x128xf32, #tpu.memory_space<vmem>>, vector<1x128xf32>
    %cst = arith.constant dense<0.000000e+00> : vector<8x128xf32>
    %3 = tpu.matmul %0, %1, %cst {dimension_numbers = #tpu.dot_dimension_numbers<[1], [0], [0], [1], [0, 0, 1, 1], [], []>} : vector<8x784xbf16>, vector<784x128xbf16>, vector<8x128xf32> -> vector<8x128xf32>
    %4 = vector.broadcast %2 : vector<1x128xf32> to vector<8x128xf32>
    %5 = arith.addf %3, %4 : vector<8x128xf32>
    %cst_5 = arith.constant 5.000000e-01 : f32
    %6 = vector.broadcast %cst_5 : f32 to vector<8x128xf32>
    %7 = arith.mulf %6, %5 : vector<8x128xf32>
    %8 = math.tanh %7 : vector<8x128xf32>
    %cst_6 = arith.constant 1.000000e+00 : f32
    %9 = vector.broadcast %cst_6 : f32 to vector<8x128xf32>
    %10 = arith.addf %8, %9 : vector<8x128xf32>
    %cst_7 = arith.constant 5.000000e-01 : f32
    %11 = vector.broadcast %cst_7 : f32 to vector<8x128xf32>
    %12 = arith.mulf %11, %10 : vector<8x128xf32>
    %c0_8 = arith.constant 0 : index
    %c0_9 = arith.constant 0 : index
    %13 = vector.load %arg4[%c0_8, %c0_9] : memref<128x128xbf16, #tpu.memory_space<vmem>>, vector<128x128xbf16>
    %c0_10 = arith.constant 0 : index
    %c0_11 = arith.constant 0 : index
    %14 = vector.load %arg5[%c0_10, %c0_11] : memref<1x128xf32, #tpu.memory_space<vmem>>, vector<1x128xf32>
    %15 = arith.truncf %12 : vector<8x128xf32> to vector<8x128xbf16>
    %cst_12 = arith.constant dense<0.000000e+00> : vector<8x128xf32>
    %16 = tpu.matmul %15, %13, %cst_12 {dimension_numbers = #tpu.dot_dimension_numbers<[1], [0], [0], [1], [0, 0, 1, 1], [], []>} : vector<8x128xbf16>, vector<128x128xbf16>, vector<8x128xf32> -> vector<8x128xf32>
    %17 = vector.broadcast %14 : vector<1x128xf32> to vector<8x128xf32>
    %18 = arith.addf %16, %17 : vector<8x128xf32>
    %cst_13 = arith.constant 5.000000e-01 : f32
    %19 = vector.broadcast %cst_13 : f32 to vector<8x128xf32>
    %20 = arith.mulf %19, %18 : vector<8x128xf32>
    %21 = math.tanh %20 : vector<8x128xf32>
    %cst_14 = arith.constant 1.000000e+00 : f32
    %22 = vector.broadcast %cst_14 : f32 to vector<8x128xf32>
    %23 = arith.addf %21, %22 : vector<8x128xf32>
    %cst_15 = arith.constant 5.000000e-01 : f32
    %24 = vector.broadcast %cst_15 : f32 to vector<8x128xf32>
    %25 = arith.mulf %24, %23 : vector<8x128xf32>
    %c0_16 = arith.constant 0 : index
    %c0_17 = arith.constant 0 : index
    %26 = vector.load %arg6[%c0_16, %c0_17] : memref<128x128xbf16, #tpu.memory_space<vmem>>, vector<128x128xbf16>
    %c0_18 = arith.constant 0 : index
    %c0_19 = arith.constant 0 : index
    %27 = vector.load %arg7[%c0_18, %c0_19] : memref<1x128xf32, #tpu.memory_space<vmem>>, vector<1x128xf32>
    %28 = arith.truncf %25 : vector<8x128xf32> to vector<8x128xbf16>
    %cst_20 = arith.constant dense<0.000000e+00> : vector<8x128xf32>
    %29 = tpu.matmul %28, %26, %cst_20 {dimension_numbers = #tpu.dot_dimension_numbers<[1], [0], [0], [1], [0, 0, 1, 1], [], []>} : vector<8x128xbf16>, vector<128x128xbf16>, vector<8x128xf32> -> vector<8x128xf32>
    %30 = vector.broadcast %27 : vector<1x128xf32> to vector<8x128xf32>
    %31 = arith.addf %29, %30 : vector<8x128xf32>
    %cst_21 = arith.constant 5.000000e-01 : f32
    %32 = vector.broadcast %cst_21 : f32 to vector<8x128xf32>
    %33 = arith.mulf %32, %31 : vector<8x128xf32>
    %34 = math.tanh %33 : vector<8x128xf32>
    %cst_22 = arith.constant 1.000000e+00 : f32
    %35 = vector.broadcast %cst_22 : f32 to vector<8x128xf32>
    %36 = arith.addf %34, %35 : vector<8x128xf32>
    %cst_23 = arith.constant 5.000000e-01 : f32
    %37 = vector.broadcast %cst_23 : f32 to vector<8x128xf32>
    %38 = arith.mulf %37, %36 : vector<8x128xf32>
    %c0_24 = arith.constant 0 : index
    %c0_25 = arith.constant 0 : index
    %39 = vector.load %arg8[%c0_24, %c0_25] : memref<128x128xbf16, #tpu.memory_space<vmem>>, vector<128x128xbf16>
    %c0_26 = arith.constant 0 : index
    %c0_27 = arith.constant 0 : index
    %40 = vector.load %arg9[%c0_26, %c0_27] : memref<1x128xf32, #tpu.memory_space<vmem>>, vector<1x128xf32>
    %41 = arith.truncf %38 : vector<8x128xf32> to vector<8x128xbf16>
    %cst_28 = arith.constant dense<0.000000e+00> : vector<8x128xf32>
    %42 = tpu.matmul %41, %39, %cst_28 {dimension_numbers = #tpu.dot_dimension_numbers<[1], [0], [0], [1], [0, 0, 1, 1], [], []>} : vector<8x128xbf16>, vector<128x128xbf16>, vector<8x128xf32> -> vector<8x128xf32>
    %43 = vector.broadcast %40 : vector<1x128xf32> to vector<8x128xf32>
    %44 = arith.addf %42, %43 : vector<8x128xf32>
    %cst_29 = arith.constant 5.000000e-01 : f32
    %45 = vector.broadcast %cst_29 : f32 to vector<8x128xf32>
    %46 = arith.mulf %45, %44 : vector<8x128xf32>
    %47 = math.tanh %46 : vector<8x128xf32>
    %cst_30 = arith.constant 1.000000e+00 : f32
    %48 = vector.broadcast %cst_30 : f32 to vector<8x128xf32>
    %49 = arith.addf %47, %48 : vector<8x128xf32>
    %cst_31 = arith.constant 5.000000e-01 : f32
    %50 = vector.broadcast %cst_31 : f32 to vector<8x128xf32>
    %51 = arith.mulf %50, %49 : vector<8x128xf32>
    %c0_32 = arith.constant 0 : index
    %c0_33 = arith.constant 0 : index
    %52 = vector.load %arg10[%c0_32, %c0_33] : memref<128x128xbf16, #tpu.memory_space<vmem>>, vector<128x128xbf16>
    %c0_34 = arith.constant 0 : index
    %c0_35 = arith.constant 0 : index
    %53 = vector.load %arg11[%c0_34, %c0_35] : memref<1x128xf32, #tpu.memory_space<vmem>>, vector<1x128xf32>
    %54 = arith.truncf %51 : vector<8x128xf32> to vector<8x128xbf16>
    %cst_36 = arith.constant dense<0.000000e+00> : vector<8x128xf32>
    %55 = tpu.matmul %54, %52, %cst_36 {dimension_numbers = #tpu.dot_dimension_numbers<[1], [0], [0], [1], [0, 0, 1, 1], [], []>} : vector<8x128xbf16>, vector<128x128xbf16>, vector<8x128xf32> -> vector<8x128xf32>
    %56 = vector.broadcast %53 : vector<1x128xf32> to vector<8x128xf32>
    %57 = arith.addf %55, %56 : vector<8x128xf32>
    %cst_37 = arith.constant 5.000000e-01 : f32
    %58 = vector.broadcast %cst_37 : f32 to vector<8x128xf32>
    %59 = arith.mulf %58, %57 : vector<8x128xf32>
    %60 = math.tanh %59 : vector<8x128xf32>
    %cst_38 = arith.constant 1.000000e+00 : f32
    %61 = vector.broadcast %cst_38 : f32 to vector<8x128xf32>
    %62 = arith.addf %60, %61 : vector<8x128xf32>
    %cst_39 = arith.constant 5.000000e-01 : f32
    %63 = vector.broadcast %cst_39 : f32 to vector<8x128xf32>
    %64 = arith.mulf %63, %62 : vector<8x128xf32>
    %c0_40 = arith.constant 0 : index
    %c0_41 = arith.constant 0 : index
    %65 = vector.load %arg12[%c0_40, %c0_41] : memref<128x128xbf16, #tpu.memory_space<vmem>>, vector<128x128xbf16>
    %c0_42 = arith.constant 0 : index
    %c0_43 = arith.constant 0 : index
    %66 = vector.load %arg13[%c0_42, %c0_43] : memref<1x128xf32, #tpu.memory_space<vmem>>, vector<1x128xf32>
    %67 = arith.truncf %64 : vector<8x128xf32> to vector<8x128xbf16>
    %cst_44 = arith.constant dense<0.000000e+00> : vector<8x128xf32>
    %68 = tpu.matmul %67, %65, %cst_44 {dimension_numbers = #tpu.dot_dimension_numbers<[1], [0], [0], [1], [0, 0, 1, 1], [], []>} : vector<8x128xbf16>, vector<128x128xbf16>, vector<8x128xf32> -> vector<8x128xf32>
    %69 = vector.broadcast %66 : vector<1x128xf32> to vector<8x128xf32>
    %70 = arith.addf %68, %69 : vector<8x128xf32>
    %cst_45 = arith.constant 5.000000e-01 : f32
    %71 = vector.broadcast %cst_45 : f32 to vector<8x128xf32>
    %72 = arith.mulf %71, %70 : vector<8x128xf32>
    %73 = math.tanh %72 : vector<8x128xf32>
    %cst_46 = arith.constant 1.000000e+00 : f32
    %74 = vector.broadcast %cst_46 : f32 to vector<8x128xf32>
    %75 = arith.addf %73, %74 : vector<8x128xf32>
    %cst_47 = arith.constant 5.000000e-01 : f32
    %76 = vector.broadcast %cst_47 : f32 to vector<8x128xf32>
    %77 = arith.mulf %76, %75 : vector<8x128xf32>
    %c0_48 = arith.constant 0 : index
    %c0_49 = arith.constant 0 : index
    %78 = vector.load %arg14[%c0_48, %c0_49] : memref<128x128xbf16, #tpu.memory_space<vmem>>, vector<128x128xbf16>
    %c0_50 = arith.constant 0 : index
    %c0_51 = arith.constant 0 : index
    %79 = vector.load %arg15[%c0_50, %c0_51] : memref<1x128xf32, #tpu.memory_space<vmem>>, vector<1x128xf32>
    %80 = arith.truncf %77 : vector<8x128xf32> to vector<8x128xbf16>
    %cst_52 = arith.constant dense<0.000000e+00> : vector<8x128xf32>
    %81 = tpu.matmul %80, %78, %cst_52 {dimension_numbers = #tpu.dot_dimension_numbers<[1], [0], [0], [1], [0, 0, 1, 1], [], []>} : vector<8x128xbf16>, vector<128x128xbf16>, vector<8x128xf32> -> vector<8x128xf32>
    %82 = vector.broadcast %79 : vector<1x128xf32> to vector<8x128xf32>
    %83 = arith.addf %81, %82 : vector<8x128xf32>
    %cst_53 = arith.constant 5.000000e-01 : f32
    %84 = vector.broadcast %cst_53 : f32 to vector<8x128xf32>
    %85 = arith.mulf %84, %83 : vector<8x128xf32>
    %86 = math.tanh %85 : vector<8x128xf32>
    %cst_54 = arith.constant 1.000000e+00 : f32
    %87 = vector.broadcast %cst_54 : f32 to vector<8x128xf32>
    %88 = arith.addf %86, %87 : vector<8x128xf32>
    %cst_55 = arith.constant 5.000000e-01 : f32
    %89 = vector.broadcast %cst_55 : f32 to vector<8x128xf32>
    %90 = arith.mulf %89, %88 : vector<8x128xf32>
    %c0_56 = arith.constant 0 : index
    %c0_57 = arith.constant 0 : index
    %91 = vector.load %arg16[%c0_56, %c0_57] : memref<128x128xbf16, #tpu.memory_space<vmem>>, vector<128x128xbf16>
    %c0_58 = arith.constant 0 : index
    %c0_59 = arith.constant 0 : index
    %92 = vector.load %arg17[%c0_58, %c0_59] : memref<1x128xf32, #tpu.memory_space<vmem>>, vector<1x128xf32>
    %93 = arith.truncf %90 : vector<8x128xf32> to vector<8x128xbf16>
    %cst_60 = arith.constant dense<0.000000e+00> : vector<8x128xf32>
    %94 = tpu.matmul %93, %91, %cst_60 {dimension_numbers = #tpu.dot_dimension_numbers<[1], [0], [0], [1], [0, 0, 1, 1], [], []>} : vector<8x128xbf16>, vector<128x128xbf16>, vector<8x128xf32> -> vector<8x128xf32>
    %95 = vector.broadcast %92 : vector<1x128xf32> to vector<8x128xf32>
    %96 = arith.addf %94, %95 : vector<8x128xf32>
    %c0_61 = arith.constant 0 : index
    %c0_62 = arith.constant 0 : index
    %97 = vector.load %arg18[%c0_61, %c0_62] : memref<8x128xf32, #tpu.memory_space<vmem>>, vector<8x128xf32>
    tpu.vector_store %arg18[%c0_61, %c0_62], %96 {strides = array<i32>} : memref<8x128xf32, #tpu.memory_space<vmem>>, vector<8x128xf32>,
    return
  }
  func.func @transform_0(%arg0: i32) -> (i32, i32) {
    %c0_i32 = arith.constant 0 : i32
    %c0_i32_0 = arith.constant 0 : i32
    return %arg0, %c0_i32 : i32, i32
  }
  func.func @transform_1(%arg0: i32) -> (i32, i32) {
    %c0_i32 = arith.constant 0 : i32
    %c0_i32_0 = arith.constant 0 : i32
    %c0_i32_1 = arith.constant 0 : i32
    return %c0_i32, %c0_i32_0 : i32, i32
  }
  func.func @transform_2(%arg0: i32) -> (i32, i32) {
    %c0_i32 = arith.constant 0 : i32
    %c0_i32_0 = arith.constant 0 : i32
    %c0_i32_1 = arith.constant 0 : i32
    return %c0_i32, %c0_i32_0 : i32, i32
  }
  func.func @transform_3(%arg0: i32) -> (i32, i32) {
    %c0_i32 = arith.constant 0 : i32
    %c0_i32_0 = arith.constant 0 : i32
    %c0_i32_1 = arith.constant 0 : i32
    return %c0_i32, %c0_i32_0 : i32, i32
  }
  func.func @transform_4(%arg0: i32) -> (i32, i32) {
    %c0_i32 = arith.constant 0 : i32
    %c0_i32_0 = arith.constant 0 : i32
    %c0_i32_1 = arith.constant 0 : i32
    return %c0_i32, %c0_i32_0 : i32, i32
  }
  func.func @transform_5(%arg0: i32) -> (i32, i32) {
    %c0_i32 = arith.constant 0 : i32
    %c0_i32_0 = arith.constant 0 : i32
    %c0_i32_1 = arith.constant 0 : i32
    return %c0_i32, %c0_i32_0 : i32, i32
  }
  func.func @transform_6(%arg0: i32) -> (i32, i32) {
    %c0_i32 = arith.constant 0 : i32
    %c0_i32_0 = arith.constant 0 : i32
    %c0_i32_1 = arith.constant 0 : i32
    return %c0_i32, %c0_i32_0 : i32, i32
  }
  func.func @transform_7(%arg0: i32) -> (i32, i32) {
    %c0_i32 = arith.constant 0 : i32
    %c0_i32_0 = arith.constant 0 : i32
    %c0_i32_1 = arith.constant 0 : i32
    return %c0_i32, %c0_i32_0 : i32, i32
  }
  func.func @transform_8(%arg0: i32) -> (i32, i32) {
    %c0_i32 = arith.constant 0 : i32
    %c0_i32_0 = arith.constant 0 : i32
    %c0_i32_1 = arith.constant 0 : i32
    return %c0_i32, %c0_i32_0 : i32, i32
  }
  func.func @transform_9(%arg0: i32) -> (i32, i32) {
    %c0_i32 = arith.constant 0 : i32
    %c0_i32_0 = arith.constant 0 : i32
    %c0_i32_1 = arith.constant 0 : i32
    return %c0_i32, %c0_i32_0 : i32, i32
  }
  func.func @transform_10(%arg0: i32) -> (i32, i32) {
    %c0_i32 = arith.constant 0 : i32
    %c0_i32_0 = arith.constant 0 : i32
    %c0_i32_1 = arith.constant 0 : i32
    return %c0_i32, %c0_i32_0 : i32, i32
  }
  func.func @transform_11(%arg0: i32) -> (i32, i32) {
    %c0_i32 = arith.constant 0 : i32
    %c0_i32_0 = arith.constant 0 : i32
    %c0_i32_1 = arith.constant 0 : i32
    return %c0_i32, %c0_i32_0 : i32, i32
  }
  func.func @transform_12(%arg0: i32) -> (i32, i32) {
    %c0_i32 = arith.constant 0 : i32
    %c0_i32_0 = arith.constant 0 : i32
    %c0_i32_1 = arith.constant 0 : i32
    return %c0_i32, %c0_i32_0 : i32, i32
  }
  func.func @transform_13(%arg0: i32) -> (i32, i32) {
    %c0_i32 = arith.constant 0 : i32
    %c0_i32_0 = arith.constant 0 : i32
    %c0_i32_1 = arith.constant 0 : i32
    return %c0_i32, %c0_i32_0 : i32, i32
  }
  func.func @transform_14(%arg0: i32) -> (i32, i32) {
    %c0_i32 = arith.constant 0 : i32
    %c0_i32_0 = arith.constant 0 : i32
    %c0_i32_1 = arith.constant 0 : i32
    return %c0_i32, %c0_i32_0 : i32, i32
  }
  func.func @transform_15(%arg0: i32) -> (i32, i32) {
    %c0_i32 = arith.constant 0 : i32
    %c0_i32_0 = arith.constant 0 : i32
    %c0_i32_1 = arith.constant 0 : i32
    return %c0_i32, %c0_i32_0 : i32, i32
  }
  func.func @transform_16(%arg0: i32) -> (i32, i32) {
    %c0_i32 = arith.constant 0 : i32
    %c0_i32_0 = arith.constant 0 : i32
    %c0_i32_1 = arith.constant 0 : i32
    return %c0_i32, %c0_i32_0 : i32, i32
  }
  func.func @transform_17(%arg0: i32) -> (i32, i32) {
    %c0_i32 = arith.constant 0 : i32
    %c0_i32_0 = arith.constant 0 : i32
    return %arg0, %c0_i32 : i32, i32
  }
}

</mosaic_0001>

<llo_original>
// kernel: mlp_forward.1
$region0: #{mlp_forward.1}
  #allocation0 [shape = 'u32[]', space=smem, size = 0x4, offset = 0x4, fixed_abs, tag = 'smem constant byte address 0x4 - core index']
  #allocation1 [shape = 'u32[144,128]{1,0:T(1,128)}', space=vmem, size = 0x12000, scoped, tag = 'internal scratch']
  %s0 = inlined_call_operand.vmem [shape: bf16[8,784], index: 0, kind: input, shape index: {}]
  %s1 = inlined_call_operand.vmem [shape: bf16[784,128], index: 1, kind: input, shape index: {}]
  %s2 = inlined_call_operand.vmem [shape: f32[1,128], index: 2, kind: input, shape index: {}]
  %s3 = inlined_call_operand.vmem [shape: bf16[128,128], index: 3, kind: input, shape index: {}]
  %s4 = inlined_call_operand.vmem [shape: f32[1,128], index: 4, kind: input, shape index: {}]
  %s5 = inlined_call_operand.hbm [shape: bf16[128,128], index: 5, kind: input, shape index: {}]
  %s6 = inlined_call_operand.vmem [shape: f32[1,128], index: 6, kind: input, shape index: {}]
  %s7 = inlined_call_operand.hbm [shape: bf16[128,128], index: 7, kind: input, shape index: {}]
  %s8 = inlined_call_operand.vmem [shape: f32[1,128], index: 8, kind: input, shape index: {}]
  %s9 = inlined_call_operand.vmem [shape: bf16[128,128], index: 9, kind: input, shape index: {}]
  %s10 = inlined_call_operand.hbm [shape: f32[1,128], index: 10, kind: input, shape index: {}]
  %s11 = inlined_call_operand.hbm [shape: bf16[128,128], index: 11, kind: input, shape index: {}]
  %s12 = inlined_call_operand.vmem [shape: f32[1,128], index: 12, kind: input, shape index: {}]
  %s13 = inlined_call_operand.hbm [shape: bf16[128,128], index: 13, kind: input, shape index: {}]
  %s14 = inlined_call_operand.vmem [shape: f32[1,128], index: 14, kind: input, shape index: {}]
  %s15 = inlined_call_operand.hbm [shape: bf16[128,128], index: 15, kind: input, shape index: {}]
  %s16 = inlined_call_operand.vmem [shape: f32[1,128], index: 16, kind: input, shape index: {}]
  %s17 = inlined_call_operand.hbm [shape: f32[8,128], index: 17, kind: output, shape index: {}]
  %s18 = sld [smem:[#allocation0]]
  $region102: #{mlp_forward.1} parent=0
    _
  %s20 = ssub.s32 1, %s18
  %s21 = scalar_select 0, %s20, %s18
  $region1: #{mlp_forward.1} parent=0
    #allocation2 [shape = 'u8[32768]{0}', space=vmem, size = 0x8000, scoped, tag = 'input window, operand 5, single buffered']
    #allocation3 [shape = 's32[1]{0}', space=sflag, size = 0x4, scoped, tag = 'scoped memory for mlp_forward.1']
    #allocation4 [shape = 's32[1]{0}', space=sflag, size = 0x4, scoped, tag = 'scoped memory for mlp_forward.1']
    #allocation5 [shape = 'u8[32768]{0}', space=vmem, size = 0x8000, scoped, tag = 'input window, operand 7, single buffered']
    #allocation6 [shape = 's32[1]{0}', space=sflag, size = 0x4, scoped, tag = 'scoped memory for mlp_forward.1']
    #allocation7 [shape = 'u8[512]{0}', space=vmem, size = 0x400, scoped, tag = 'input window, operand 10, single buffered']
    #allocation8 [shape = 'u8[32768]{0}', space=vmem, size = 0x8000, scoped, tag = 'input window, operand 11, single buffered']
    #allocation9 [shape = 's32[1]{0}', space=sflag, size = 0x4, scoped, tag = 'scoped memory for mlp_forward.1']
    #allocation10 [shape = 'u8[32768]{0}', space=vmem, size = 0x8000, scoped, tag = 'input window, operand 13, single buffered']
    #allocation11 [shape = 'u8[32768]{0}', space=vmem, size = 0x8000, scoped, tag = 'input window, operand 15, single buffered']
    #allocation12 [shape = 's32[1]{0}', space=sflag, size = 0x4, scoped, tag = 'scoped memory for mlp_forward.1']
    #allocation13 [shape = 'u8[4096]{0}', space=vmem, size = 0x1000, scoped, tag = 'output window, operand 0, single buffered']
    %22 = vsyncpa [#allocation3], 0
    %23 = vsyncpa [#allocation6], 0
    %24 = vsyncpa [#allocation9], 0
    %25 = vsyncpa [#allocation12], 0
    %26 = vsyncpa [#allocation4], 0
    // Predicated region
    $region2: #{mlp_forward.1} parent=1 // pred_check
      _
    $region3: #{mlp_forward.1} parent=1 // pred_check_branch
      %28 = sbr.rel (0) target = $region5
    $region4: #{mlp_forward.1} parent=1 // pred_region
      _
    $region5: #{mlp_forward.1} parent=1 // pred_fallthru
      _
    // Predicated region
    $region6: #{mlp_forward.1} parent=1 // pred_check
      _
    $region7: #{mlp_forward.1} parent=1 // pred_check_branch
      %30 = sbr.rel (0) target = $region9
    $region8: #{mlp_forward.1} parent=1 // pred_region
      _
    $region9: #{mlp_forward.1} parent=1 // pred_fallthru
      _
    // Predicated region
    $region10: #{mlp_forward.1} parent=1 // pred_check
      _
    $region11: #{mlp_forward.1} parent=1 // pred_check_branch
      %32 = sbr.rel (0) target = $region13
    $region12: #{mlp_forward.1} parent=1 // pred_region
      _
    $region13: #{mlp_forward.1} parent=1 // pred_fallthru
      _
    // Predicated region
    $region14: #{mlp_forward.1} parent=1 // pred_check
      _
    $region15: #{mlp_forward.1} parent=1 // pred_check_branch
      %34 = sbr.rel (0) target = $region17
    $region16: #{mlp_forward.1} parent=1 // pred_region
      _
    $region17: #{mlp_forward.1} parent=1 // pred_fallthru
      _
    // Predicated region
    $region18: #{mlp_forward.1} parent=1 // pred_check
      _
    $region19: #{mlp_forward.1} parent=1 // pred_check_branch
      %36 = sbr.rel (0) target = $region21
    $region20: #{mlp_forward.1} parent=1 // pred_region
      _
    $region21: #{mlp_forward.1} parent=1 // pred_fallthru
      _
    // Predicated region
    $region22: #{mlp_forward.1} parent=1 // pred_check
      _
    $region23: #{mlp_forward.1} parent=1 // pred_check_branch
      %38 = sbr.rel (0) target = $region25
    $region24: #{mlp_forward.1} parent=1 // pred_region
      %s40 = ssub.s32 1024, 1024
      %41 = vsyncadd [#allocation3], %s40
      %s42 = sshll.u32 [#allocation2], 4
      %s43 = int_to_ptr.vmem [resolvable:$true] %s42
      %48 = dma.hbm_to_vmem [thread:$0]  %s5, 1024, %s43, [#allocation3], 64, 64, 4
    $region25: #{mlp_forward.1} parent=1 // pred_fallthru
      _
    // Predicated region
    $region26: #{mlp_forward.1} parent=1 // pred_check
      _
    $region27: #{mlp_forward.1} parent=1 // pred_check_branch
      %50 = sbr.rel (0) target = $region29
    $region28: #{mlp_forward.1} parent=1 // pred_region
      _
    $region29: #{mlp_forward.1} parent=1 // pred_fallthru
      _
    // Predicated region
    $region30: #{mlp_forward.1} parent=1 // pred_check
      _
    $region31: #{mlp_forward.1} parent=1 // pred_check_branch
      %52 = sbr.rel (0) target = $region33
    $region32: #{mlp_forward.1} parent=1 // pred_region
      %s54 = ssub.s32 1024, 1024
      %55 = vsyncadd [#allocation6], %s54
      %s56 = sshll.u32 [#allocation5], 4
      %s57 = int_to_ptr.vmem [resolvable:$true] %s56
      %62 = dma.hbm_to_vmem [thread:$0]  %s7, 1024, %s57, [#allocation6], 64, 64, 4
    $region33: #{mlp_forward.1} parent=1 // pred_fallthru
      _
    // Predicated region
    $region34: #{mlp_forward.1} parent=1 // pred_check
      _
    $region35: #{mlp_forward.1} parent=1 // pred_check_branch
      %64 = sbr.rel (0) target = $region37
    $region36: #{mlp_forward.1} parent=1 // pred_region
      _
    $region37: #{mlp_forward.1} parent=1 // pred_fallthru
      _
    // Predicated region
    $region38: #{mlp_forward.1} parent=1 // pred_check
      _
    $region39: #{mlp_forward.1} parent=1 // pred_check_branch
      %66 = sbr.rel (0) target = $region41
    $region40: #{mlp_forward.1} parent=1 // pred_region
      _
    $region41: #{mlp_forward.1} parent=1 // pred_fallthru
      _
    // Predicated region
    $region42: #{mlp_forward.1} parent=1 // pred_check
      _
    $region43: #{mlp_forward.1} parent=1 // pred_check_branch
      %68 = sbr.rel (0) target = $region45
    $region44: #{mlp_forward.1} parent=1 // pred_region
      %s70 = ssub.s32 16, 16
      %71 = vsyncadd [#allocation6], %s70
      %s73 = sshll.u32 [#allocation7], 4
      %s74 = int_to_ptr.vmem [resolvable:$true] %s73
      %76 = dma.hbm_to_vmem [thread:$0]  %s10, 16, %s74, [#allocation6]
    $region45: #{mlp_forward.1} parent=1 // pred_fallthru
      _
    // Predicated region
    $region46: #{mlp_forward.1} parent=1 // pred_check
      _
    $region47: #{mlp_forward.1} parent=1 // pred_check_branch
      %78 = sbr.rel (0) target = $region49
    $region48: #{mlp_forward.1} parent=1 // pred_region
      %s80 = ssub.s32 1024, 1024
      %81 = vsyncadd [#allocation9], %s80
      %s82 = sshll.u32 [#allocation8], 4
      %s83 = int_to_ptr.vmem [resolvable:$true] %s82
      %88 = dma.hbm_to_vmem [thread:$0]  %s11, 1024, %s83, [#allocation9], 64, 64, 4
    $region49: #{mlp_forward.1} parent=1 // pred_fallthru
      _
    // Predicated region
    $region50: #{mlp_forward.1} parent=1 // pred_check
      _
    $region51: #{mlp_forward.1} parent=1 // pred_check_branch
      %90 = sbr.rel (0) target = $region53
    $region52: #{mlp_forward.1} parent=1 // pred_region
      _
    $region53: #{mlp_forward.1} parent=1 // pred_fallthru
      _
    // Predicated region
    $region54: #{mlp_forward.1} parent=1 // pred_check
      _
    $region55: #{mlp_forward.1} parent=1 // pred_check_branch
      %92 = sbr.rel (0) target = $region57
    $region56: #{mlp_forward.1} parent=1 // pred_region
      %s94 = ssub.s32 1024, 1024
      %95 = vsyncadd [#allocation9], %s94
      %s96 = sshll.u32 [#allocation10], 4
      %s97 = int_to_ptr.vmem [resolvable:$true] %s96
      %102 = dma.hbm_to_vmem [thread:$0]  %s13, 1024, %s97, [#allocation9], 64, 64, 4
    $region57: #{mlp_forward.1} parent=1 // pred_fallthru
      _
    // Predicated region
    $region58: #{mlp_forward.1} parent=1 // pred_check
      _
    $region59: #{mlp_forward.1} parent=1 // pred_check_branch
      %104 = sbr.rel (0) target = $region61
    $region60: #{mlp_forward.1} parent=1 // pred_region
      _
    $region61: #{mlp_forward.1} parent=1 // pred_fallthru
      _
    // Predicated region
    $region62: #{mlp_forward.1} parent=1 // pred_check
      _
    $region63: #{mlp_forward.1} parent=1 // pred_check_branch
      %106 = sbr.rel (0) target = $region65
    $region64: #{mlp_forward.1} parent=1 // pred_region
      %s108 = ssub.s32 1024, 1024
      %109 = vsyncadd [#allocation12], %s108
      %s110 = sshll.u32 [#allocation11], 4
      %s111 = int_to_ptr.vmem [resolvable:$true] %s110
      %116 = dma.hbm_to_vmem [thread:$0]  %s15, 1024, %s111, [#allocation12], 64, 64, 4
    $region65: #{mlp_forward.1} parent=1 // pred_fallthru
      _
    // Predicated region
    $region66: #{mlp_forward.1} parent=1 // pred_check
      _
    $region67: #{mlp_forward.1} parent=1 // pred_check_branch
      %118 = sbr.rel (0) target = $region69
    $region68: #{mlp_forward.1} parent=1 // pred_region
      _
    $region69: #{mlp_forward.1} parent=1 // pred_fallthru
      _
    // Predicated region
    $region70: #{mlp_forward.1} parent=1 // pred_check
      _
    $region71: #{mlp_forward.1} parent=1 // pred_check_branch
      %120 = sbr.rel (0) target = $region73
    $region72: #{mlp_forward.1} parent=1 // pred_region
      %121 = dma.done [#allocation3], 1024
    $region73: #{mlp_forward.1} parent=1 // pred_fallthru
      _
    // Predicated region
    $region74: #{mlp_forward.1} parent=1 // pred_check
      _
    $region75: #{mlp_forward.1} parent=1 // pred_check_branch
      %123 = sbr.rel (0) target = $region77
    $region76: #{mlp_forward.1} parent=1 // pred_region
      %124 = dma.done [#allocation6], 1024
    $region77: #{mlp_forward.1} parent=1 // pred_fallthru
      _
    // Predicated region
    $region78: #{mlp_forward.1} parent=1 // pred_check
      _
    $region79: #{mlp_forward.1} parent=1 // pred_check_branch
      %126 = sbr.rel (0) target = $region81
    $region80: #{mlp_forward.1} parent=1 // pred_region
      %127 = dma.done [#allocation6], 16
    $region81: #{mlp_forward.1} parent=1 // pred_fallthru
      _
    // Predicated region
    $region82: #{mlp_forward.1} parent=1 // pred_check
      _
    $region83: #{mlp_forward.1} parent=1 // pred_check_branch
      %129 = sbr.rel (0) target = $region85
    $region84: #{mlp_forward.1} parent=1 // pred_region
      %130 = dma.done [#allocation9], 1024
    $region85: #{mlp_forward.1} parent=1 // pred_fallthru
      _
    // Predicated region
    $region86: #{mlp_forward.1} parent=1 // pred_check
      _
    $region87: #{mlp_forward.1} parent=1 // pred_check_branch
      %132 = sbr.rel (0) target = $region89
    $region88: #{mlp_forward.1} parent=1 // pred_region
      %133 = dma.done [#allocation9], 1024
    $region89: #{mlp_forward.1} parent=1 // pred_fallthru
      _
    // Predicated region
    $region90: #{mlp_forward.1} parent=1 // pred_check
      _
    $region91: #{mlp_forward.1} parent=1 // pred_check_branch
      %135 = sbr.rel (0) target = $region93
    $region92: #{mlp_forward.1} parent=1 // pred_region
      %136 = dma.done [#allocation12], 1024
    $region93: #{mlp_forward.1} parent=1 // pred_fallthru
      _
    %v138 = vld [vmem:[%s0] sm:$0xff]
    %v139 = vld [vmem:[%s0 + $0x8] sm:$0xff]
    %v140 = vld [vmem:[%s0 + $0x10] sm:$0xff]
    %v141 = vld [vmem:[%s0 + $0x18] sm:$0xf]
    %v142 = vld [vmem:[%s1] sm:$0xf]
    %v143 = vld [vmem:[%s1 + $0x4] sm:$0xf]
    %v144 = vld [vmem:[%s1 + $0x8] sm:$0xf]
    %v145 = vld [vmem:[%s1 + $0xc] sm:$0xf]
    %v146 = vld [vmem:[%s1 + $0x10] sm:$0xf]
    %v147 = vld [vmem:[%s1 + $0x14] sm:$0xf]
    %v148 = vld [vmem:[%s1 + $0x18] sm:$0xf]
    %v149 = vld [vmem:[%s1 + $0x1c] sm:$0xf]
    %v150 = vld [vmem:[%s1 + $0x20] sm:$0xf]
    %v151 = vld [vmem:[%s1 + $0x24] sm:$0xf]
    %v152 = vld [vmem:[%s1 + $0x28] sm:$0xf]
    %v153 = vld [vmem:[%s1 + $0x2c] sm:$0xf]
    %v154 = vld [vmem:[%s1 + $0x30] sm:$0xf]
    %v155 = vld [vmem:[%s1 + $0x34] sm:$0xf]
    %v156 = vld [vmem:[%s1 + $0x38] sm:$0xf]
    %v157 = vld [vmem:[%s1 + $0x3c] sm:$0xf]
    %v158 = vld [vmem:[%s1 + $0x40] sm:$0xf]
    %v159 = vld [vmem:[%s1 + $0x44] sm:$0xf]
    %v160 = vld [vmem:[%s1 + $0x48] sm:$0xf]
    %v161 = vld [vmem:[%s1 + $0x4c] sm:$0xf]
    %v162 = vld [vmem:[%s1 + $0x50] sm:$0xf]
    %v163 = vld [vmem:[%s1 + $0x54] sm:$0xf]
    %v164 = vld [vmem:[%s1 + $0x58] sm:$0xf]
    %v165 = vld [vmem:[%s1 + $0x5c] sm:$0xf]
    %v166 = vld [vmem:[%s1 + $0x60] sm:$0xf]
    %v167 = vld [vmem:[%s1 + $0x64] sm:$0xf]
    %v168 = vld [vmem:[%s1 + $0x68] sm:$0xf]
    %v169 = vld [vmem:[%s1 + $0x6c] sm:$0xf]
    %v170 = vld [vmem:[%s1 + $0x70] sm:$0xf]
    %v171 = vld [vmem:[%s1 + $0x74] sm:$0xf]
    %v172 = vld [vmem:[%s1 + $0x78] sm:$0xf]
    %v173 = vld [vmem:[%s1 + $0x7c] sm:$0xf]
    %v174 = vld [vmem:[%s1 + $0x80] sm:$0xf]
    %v175 = vld [vmem:[%s1 + $0x84] sm:$0xf]
    %v176 = vld [vmem:[%s1 + $0x88] sm:$0xf]
    %v177 = vld [vmem:[%s1 + $0x8c] sm:$0xf]
    %v178 = vld [vmem:[%s1 + $0x90] sm:$0xf]
    %v179 = vld [vmem:[%s1 + $0x94] sm:$0xf]
    %v180 = vld [vmem:[%s1 + $0x98] sm:$0xf]
    %v181 = vld [vmem:[%s1 + $0x9c] sm:$0xf]
    %v182 = vld [vmem:[%s1 + $0xa0] sm:$0xf]
    %v183 = vld [vmem:[%s1 + $0xa4] sm:$0xf]
    %v184 = vld [vmem:[%s1 + $0xa8] sm:$0xf]
    %v185 = vld [vmem:[%s1 + $0xac] sm:$0xf]
    %v186 = vld [vmem:[%s1 + $0xb0] sm:$0xf]
    %v187 = vld [vmem:[%s1 + $0xb4] sm:$0xf]
    %v188 = vld [vmem:[%s1 + $0xb8] sm:$0xf]
    %v189 = vld [vmem:[%s1 + $0xbc] sm:$0xf]
    %v190 = vld [vmem:[%s1 + $0xc0] sm:$0xf]
    %v191 = vld [vmem:[%s1 + $0xc4] sm:$0xf]
    %v192 = vld [vmem:[%s1 + $0xc8] sm:$0xf]
    %v193 = vld [vmem:[%s1 + $0xcc] sm:$0xf]
    %v194 = vld [vmem:[%s1 + $0xd0] sm:$0xf]
    %v195 = vld [vmem:[%s1 + $0xd4] sm:$0xf]
    %v196 = vld [vmem:[%s1 + $0xd8] sm:$0xf]
    %v197 = vld [vmem:[%s1 + $0xdc] sm:$0xf]
    %v198 = vld [vmem:[%s1 + $0xe0] sm:$0xf]
    %v199 = vld [vmem:[%s1 + $0xe4] sm:$0xf]
    %v200 = vld [vmem:[%s1 + $0xe8] sm:$0xf]
    %v201 = vld [vmem:[%s1 + $0xec] sm:$0xf]
    %v202 = vld [vmem:[%s1 + $0xf0] sm:$0xf]
    %v203 = vld [vmem:[%s1 + $0xf4] sm:$0xf]
    %v204 = vld [vmem:[%s1 + $0xf8] sm:$0xf]
    %v205 = vld [vmem:[%s1 + $0xfc] sm:$0xf]
    %v206 = vld [vmem:[%s1 + $0x100] sm:$0xf]
    %v207 = vld [vmem:[%s1 + $0x104] sm:$0xf]
    %v208 = vld [vmem:[%s1 + $0x108] sm:$0xf]
    %v209 = vld [vmem:[%s1 + $0x10c] sm:$0xf]
    %v210 = vld [vmem:[%s1 + $0x110] sm:$0xf]
    %v211 = vld [vmem:[%s1 + $0x114] sm:$0xf]
    %v212 = vld [vmem:[%s1 + $0x118] sm:$0xf]
    %v213 = vld [vmem:[%s1 + $0x11c] sm:$0xf]
    %v214 = vld [vmem:[%s1 + $0x120] sm:$0xf]
    %v215 = vld [vmem:[%s1 + $0x124] sm:$0xf]
    %v216 = vld [vmem:[%s1 + $0x128] sm:$0xf]
    %v217 = vld [vmem:[%s1 + $0x12c] sm:$0xf]
    %v218 = vld [vmem:[%s1 + $0x130] sm:$0xf]
    %v219 = vld [vmem:[%s1 + $0x134] sm:$0xf]
    %v220 = vld [vmem:[%s1 + $0x138] sm:$0xf]
    %v221 = vld [vmem:[%s1 + $0x13c] sm:$0xf]
    %v222 = vld [vmem:[%s1 + $0x140] sm:$0xf]
    %v223 = vld [vmem:[%s1 + $0x144] sm:$0xf]
    %v224 = vld [vmem:[%s1 + $0x148] sm:$0xf]
    %v225 = vld [vmem:[%s1 + $0x14c] sm:$0xf]
    %v226 = vld [vmem:[%s1 + $0x150] sm:$0xf]
    %v227 = vld [vmem:[%s1 + $0x154] sm:$0xf]
    %v228 = vld [vmem:[%s1 + $0x158] sm:$0xf]
    %v229 = vld [vmem:[%s1 + $0x15c] sm:$0xf]
    %v230 = vld [vmem:[%s1 + $0x160] sm:$0xf]
    %v231 = vld [vmem:[%s1 + $0x164] sm:$0xf]
    %v232 = vld [vmem:[%s1 + $0x168] sm:$0xf]
    %v233 = vld [vmem:[%s1 + $0x16c] sm:$0xf]
    %v234 = vld [vmem:[%s1 + $0x170] sm:$0xf]
    %v235 = vld [vmem:[%s1 + $0x174] sm:$0xf]
    %v236 = vld [vmem:[%s1 + $0x178] sm:$0xf]
    %v237 = vld [vmem:[%s1 + $0x17c] sm:$0xf]
    %v238 = vld [vmem:[%s1 + $0x180] sm:$0xf]
    %v239 = vld [vmem:[%s1 + $0x184] sm:$0xf]
    %v240 = vld [vmem:[%s2] sm:$0x1]
    %v242 = vlaneseq
    %v243 = vshrl.u32 %v242, 7
    %v244 = vsub.s32 0, %v243
    %v245 = vrot.slane %v240, %v244
    %v251 = vunpack.c.l.b16 %v138
    %v252 = vunpack.c.h.b16 %v138
    %v253 = vunpack.c.l.b16 %v139
    %v254 = vunpack.c.h.b16 %v139
    %v255 = vunpack.c.l.b16 %v140
    %v256 = vunpack.c.h.b16 %v140
    %v257 = vunpack.c.l.b16 %v141
    %v258 = vpack.c.b16 %v251, %v251
    %v259 = vpack.c.b16 %v252, %v252
    %v260 = vpack.c.b16 %v253, %v253
    %v261 = vpack.c.b16 %v254, %v254
    %v262 = vpack.c.b16 %v255, %v255
    %v263 = vpack.c.b16 %v256, %v256
    %v264 = vpack.c.b16 %v257, %v257
    %v369 = vunpack.c.l.b16 %v142
    %v370 = vunpack.c.l.b16 %v143
    %v371 = vunpack.c.l.b16 %v144
    %v372 = vunpack.c.l.b16 %v145
    %v373 = vunpack.c.l.b16 %v146
    %v374 = vunpack.c.l.b16 %v147
    %v375 = vunpack.c.l.b16 %v148
    %v376 = vunpack.c.l.b16 %v149
    %v377 = vunpack.c.l.b16 %v150
    %v378 = vunpack.c.l.b16 %v151
    %v379 = vunpack.c.l.b16 %v152
    %v380 = vunpack.c.l.b16 %v153
    %v381 = vunpack.c.l.b16 %v154
    %v382 = vunpack.c.l.b16 %v155
    %v383 = vunpack.c.l.b16 %v156
    %v384 = vunpack.c.l.b16 %v157
    %v385 = vunpack.c.l.b16 %v158
    %v386 = vunpack.c.l.b16 %v159
    %v387 = vunpack.c.l.b16 %v160
    %v388 = vunpack.c.l.b16 %v161
    %v389 = vunpack.c.l.b16 %v162
    %v390 = vunpack.c.l.b16 %v163
    %v391 = vunpack.c.l.b16 %v164
    %v392 = vunpack.c.l.b16 %v165
    %v393 = vunpack.c.l.b16 %v166
    %v394 = vunpack.c.l.b16 %v167
    %v395 = vunpack.c.l.b16 %v168
    %v396 = vunpack.c.l.b16 %v169
    %v397 = vunpack.c.l.b16 %v170
    %v398 = vunpack.c.l.b16 %v171
    %v399 = vunpack.c.l.b16 %v172
    %v400 = vunpack.c.l.b16 %v173
    %v401 = vunpack.c.l.b16 %v174
    %v402 = vunpack.c.l.b16 %v175
    %v403 = vunpack.c.l.b16 %v176
    %v404 = vunpack.c.l.b16 %v177
    %v405 = vunpack.c.l.b16 %v178
    %v406 = vunpack.c.l.b16 %v179
    %v407 = vunpack.c.l.b16 %v180
    %v408 = vunpack.c.l.b16 %v181
    %v409 = vunpack.c.l.b16 %v182
    %v410 = vunpack.c.l.b16 %v183
    %v411 = vunpack.c.l.b16 %v184
    %v412 = vunpack.c.l.b16 %v185
    %v413 = vunpack.c.l.b16 %v186
    %v414 = vunpack.c.l.b16 %v187
    %v415 = vunpack.c.l.b16 %v188
    %v416 = vunpack.c.l.b16 %v189
    %v417 = vunpack.c.l.b16 %v190
    %v418 = vunpack.c.l.b16 %v191
    %v419 = vunpack.c.l.b16 %v192
    %v420 = vunpack.c.l.b16 %v193
    %v421 = vunpack.c.l.b16 %v194
    %v422 = vunpack.c.l.b16 %v195
    %v423 = vunpack.c.l.b16 %v196
    %v424 = vunpack.c.l.b16 %v197
    %v425 = vunpack.c.l.b16 %v198
    %v426 = vunpack.c.l.b16 %v199
    %v427 = vunpack.c.l.b16 %v200
    %v428 = vunpack.c.l.b16 %v201
    %v429 = vunpack.c.l.b16 %v202
    %v430 = vunpack.c.l.b16 %v203
    %v431 = vunpack.c.l.b16 %v204
    %v432 = vunpack.c.l.b16 %v205
    %v433 = vunpack.c.l.b16 %v206
    %v434 = vunpack.c.l.b16 %v207
    %v435 = vunpack.c.l.b16 %v208
    %v436 = vunpack.c.l.b16 %v209
    %v437 = vunpack.c.l.b16 %v210
    %v438 = vunpack.c.l.b16 %v211
    %v439 = vunpack.c.l.b16 %v212
    %v440 = vunpack.c.l.b16 %v213
    %v441 = vunpack.c.l.b16 %v214
    %v442 = vunpack.c.l.b16 %v215
    %v443 = vunpack.c.l.b16 %v216
    %v444 = vunpack.c.l.b16 %v217
    %v445 = vunpack.c.l.b16 %v218
    %v446 = vunpack.c.l.b16 %v219
    %v447 = vunpack.c.l.b16 %v220
    %v448 = vunpack.c.l.b16 %v221
    %v449 = vunpack.c.l.b16 %v222
    %v450 = vunpack.c.l.b16 %v223
    %v451 = vunpack.c.l.b16 %v224
    %v452 = vunpack.c.l.b16 %v225
    %v453 = vunpack.c.l.b16 %v226
    %v454 = vunpack.c.l.b16 %v227
    %v455 = vunpack.c.l.b16 %v228
    %v456 = vunpack.c.l.b16 %v229
    %v457 = vunpack.c.l.b16 %v230
    %v458 = vunpack.c.l.b16 %v231
    %v459 = vunpack.c.l.b16 %v232
    %v460 = vunpack.c.l.b16 %v233
    %v461 = vunpack.c.l.b16 %v234
    %v462 = vunpack.c.l.b16 %v235
    %v463 = vunpack.c.l.b16 %v236
    %v464 = vunpack.c.l.b16 %v237
    %v465 = vunpack.c.l.b16 %v238
    %v466 = vunpack.c.l.b16 %v239
    %v467 = vpack.c.b16 %v370, %v369
    %v468 = vpack.c.b16 %v372, %v371
    %v469 = vpack.c.b16 %v374, %v373
    %v470 = vpack.c.b16 %v376, %v375
    %v471 = vpack.c.b16 %v378, %v377
    %v472 = vpack.c.b16 %v380, %v379
    %v473 = vpack.c.b16 %v382, %v381
    %v474 = vpack.c.b16 %v384, %v383
    %v475 = vpack.c.b16 %v386, %v385
    %v476 = vpack.c.b16 %v388, %v387
    %v477 = vpack.c.b16 %v390, %v389
    %v478 = vpack.c.b16 %v392, %v391
    %v479 = vpack.c.b16 %v394, %v393
    %v480 = vpack.c.b16 %v396, %v395
    %v481 = vpack.c.b16 %v398, %v397
    %v482 = vpack.c.b16 %v400, %v399
    %v483 = vpack.c.b16 %v402, %v401
    %v484 = vpack.c.b16 %v404, %v403
    %v485 = vpack.c.b16 %v406, %v405
    %v486 = vpack.c.b16 %v408, %v407
    %v487 = vpack.c.b16 %v410, %v409
    %v488 = vpack.c.b16 %v412, %v411
    %v489 = vpack.c.b16 %v414, %v413
    %v490 = vpack.c.b16 %v416, %v415
    %v491 = vpack.c.b16 %v418, %v417
    %v492 = vpack.c.b16 %v420, %v419
    %v493 = vpack.c.b16 %v422, %v421
    %v494 = vpack.c.b16 %v424, %v423
    %v495 = vpack.c.b16 %v426, %v425
    %v496 = vpack.c.b16 %v428, %v427
    %v497 = vpack.c.b16 %v430, %v429
    %v498 = vpack.c.b16 %v432, %v431
    %v499 = vpack.c.b16 %v434, %v433
    %v500 = vpack.c.b16 %v436, %v435
    %v501 = vpack.c.b16 %v438, %v437
    %v502 = vpack.c.b16 %v440, %v439
    %v503 = vpack.c.b16 %v442, %v441
    %v504 = vpack.c.b16 %v444, %v443
    %v505 = vpack.c.b16 %v446, %v445
    %v506 = vpack.c.b16 %v448, %v447
    %v507 = vpack.c.b16 %v450, %v449
    %v508 = vpack.c.b16 %v452, %v451
    %v509 = vpack.c.b16 %v454, %v453
    %v510 = vpack.c.b16 %v456, %v455
    %v511 = vpack.c.b16 %v458, %v457
    %v512 = vpack.c.b16 %v460, %v459
    %v513 = vpack.c.b16 %v462, %v461
    %v514 = vpack.c.b16 %v464, %v463
    %v515 = vpack.c.b16 %v466, %v465
    %vm565 = vcmask 130048
    %v567 = vsel %vm565, %v264, 0
    %569 = vmatprep.subr.bf16.mxu0 0
    %570 = vmatpush1.bf16.msra.mxu0 %v474
    %571 = vmatprep.subr.bf16.mxu0 0
    %572 = vmatpush1.bf16.msra.mxu0 %v473
    %573 = vmatprep.subr.bf16.mxu0 0
    %574 = vmatpush1.bf16.msra.mxu0 %v472
    %575 = vmatprep.subr.bf16.mxu0 0
    %576 = vmatpush1.bf16.msra.mxu0 %v471
    %577 = vmatprep.subr.bf16.mxu0 0
    %578 = vmatpush1.bf16.msra.mxu0 %v470
    %579 = vmatprep.subr.bf16.mxu0 0
    %580 = vmatpush1.bf16.msra.mxu0 %v469
    %581 = vmatprep.subr.bf16.mxu0 0
    %582 = vmatpush1.bf16.msra.mxu0 %v468
    %583 = vmatprep.subr.bf16.mxu0 0
    %584 = vmatpush1.bf16.msra.mxu0 %v467
    %585 = vmatprep.subr.bf16.mxu0 0
    %586 = vmatpush2.bf16.msra.mxu0 %v482
    %587 = vmatprep.subr.bf16.mxu0 0
    %588 = vmatpush2.bf16.msra.mxu0 %v481
    %589 = vmatprep.subr.bf16.mxu0 0
    %590 = vmatpush2.bf16.msra.mxu0 %v480
    %591 = vmatprep.subr.bf16.mxu0 0
    %592 = vmatpush2.bf16.msra.mxu0 %v479
    %593 = vmatprep.subr.bf16.mxu0 0
    %594 = vmatpush2.bf16.msra.mxu0 %v478
    %595 = vmatprep.subr.bf16.mxu0 0
    %596 = vmatpush2.bf16.msra.mxu0 %v477
    %597 = vmatprep.subr.bf16.mxu0 0
    %598 = vmatpush2.bf16.msra.mxu0 %v476
    %599 = vmatprep.subr.bf16.mxu0 0
    %600 = vmatpush2.bf16.msra.mxu0 %v475
    %601 = vmatprep.mubr.bf16.mxu0 %v259
    %602 = vmatmul.mubr.bf16.gmra.mxu0 %v258
    %v603 = vpop.f32.mrf.mxu0
    %v604 = vadd.f32 %v245, %v603
    %v605 = vpop.f32.mrf.mxu0
    %v606 = vpop.f32.mrf.mxu0
    %v607 = vpop.f32.mrf.mxu0
    %608 = vdwg.mxu0
    %609 = vmatprep.subr.bf16.mxu0 0
    %610 = vmatpush1.bf16.msra.mxu0 %v490
    %611 = vmatprep.subr.bf16.mxu0 0
    %612 = vmatpush1.bf16.msra.mxu0 %v489
    %613 = vmatprep.subr.bf16.mxu0 0
    %614 = vmatpush1.bf16.msra.mxu0 %v488
    %615 = vmatprep.subr.bf16.mxu0 0
    %616 = vmatpush1.bf16.msra.mxu0 %v487
    %617 = vmatprep.subr.bf16.mxu0 0
    %618 = vmatpush1.bf16.msra.mxu0 %v486
    %619 = vmatprep.subr.bf16.mxu0 0
    %620 = vmatpush1.bf16.msra.mxu0 %v485
    %621 = vmatprep.subr.bf16.mxu0 0
    %622 = vmatpush1.bf16.msra.mxu0 %v484
    %623 = vmatprep.subr.bf16.mxu0 0
    %624 = vmatpush1.bf16.msra.mxu0 %v483
    %625 = vmatprep.subr.bf16.mxu0 0
    %626 = vmatpush2.bf16.msra.mxu0 %v498
    %627 = vmatprep.subr.bf16.mxu0 0
    %628 = vmatpush2.bf16.msra.mxu0 %v497
    %629 = vmatprep.subr.bf16.mxu0 0
    %630 = vmatpush2.bf16.msra.mxu0 %v496
    %631 = vmatprep.subr.bf16.mxu0 0
    %632 = vmatpush2.bf16.msra.mxu0 %v495
    %633 = vmatprep.subr.bf16.mxu0 0
    %634 = vmatpush2.bf16.msra.mxu0 %v494
    %635 = vmatprep.subr.bf16.mxu0 0
    %636 = vmatpush2.bf16.msra.mxu0 %v493
    %637 = vmatprep.subr.bf16.mxu0 0
    %638 = vmatpush2.bf16.msra.mxu0 %v492
    %639 = vmatprep.subr.bf16.mxu0 0
    %640 = vmatpush2.bf16.msra.mxu0 %v491
    %641 = vmatprep.mubr.bf16.mxu0 %v261
    %642 = vmatmul.mubr.bf16.gmra.mxu0 %v260
    %v643 = vpop.f32.mrf.mxu0
    %v644 = vadd.f32 %v604, %v643
    %v645 = vpop.f32.mrf.mxu0
    %v646 = vpop.f32.mrf.mxu0
    %v647 = vpop.f32.mrf.mxu0
    %648 = vdwg.mxu0
    %649 = vmatprep.subr.bf16.mxu0 0
    %650 = vmatpush1.bf16.msra.mxu0 %v506
    %651 = vmatprep.subr.bf16.mxu0 0
    %652 = vmatpush1.bf16.msra.mxu0 %v505
    %653 = vmatprep.subr.bf16.mxu0 0
    %654 = vmatpush1.bf16.msra.mxu0 %v504
    %655 = vmatprep.subr.bf16.mxu0 0
    %656 = vmatpush1.bf16.msra.mxu0 %v503
    %657 = vmatprep.subr.bf16.mxu0 0
    %658 = vmatpush1.bf16.msra.mxu0 %v502
    %659 = vmatprep.subr.bf16.mxu0 0
    %660 = vmatpush1.bf16.msra.mxu0 %v501
    %661 = vmatprep.subr.bf16.mxu0 0
    %662 = vmatpush1.bf16.msra.mxu0 %v500
    %663 = vmatprep.subr.bf16.mxu0 0
    %664 = vmatpush1.bf16.msra.mxu0 %v499
    %665 = vmatprep.subr.bf16.mxu0 0
    %666 = vmatpush2.bf16.msra.mxu0 %v514
    %667 = vmatprep.subr.bf16.mxu0 0
    %668 = vmatpush2.bf16.msra.mxu0 %v513
    %669 = vmatprep.subr.bf16.mxu0 0
    %670 = vmatpush2.bf16.msra.mxu0 %v512
    %671 = vmatprep.subr.bf16.mxu0 0
    %672 = vmatpush2.bf16.msra.mxu0 %v511
    %673 = vmatprep.subr.bf16.mxu0 0
    %674 = vmatpush2.bf16.msra.mxu0 %v510
    %675 = vmatprep.subr.bf16.mxu0 0
    %676 = vmatpush2.bf16.msra.mxu0 %v509
    %677 = vmatprep.subr.bf16.mxu0 0
    %678 = vmatpush2.bf16.msra.mxu0 %v508
    %679 = vmatprep.subr.bf16.mxu0 0
    %680 = vmatpush2.bf16.msra.mxu0 %v507
    %681 = vmatprep.mubr.bf16.mxu0 %v263
    %682 = vmatmul.mubr.bf16.gmra.mxu0 %v262
    %v683 = vpop.f32.mrf.mxu0
    %v684 = vadd.f32 %v644, %v683
    %v685 = vpop.f32.mrf.mxu0
    %v686 = vpop.f32.mrf.mxu0
    %v687 = vpop.f32.mrf.mxu0
    %688 = vdwg.mxu0
    %689 = vmatprep.subr.bf16.mxu0 0
    %690 = vmatpush1.bf16.msra.mxu0 0
    %691 = vmatprep.subr.bf16.mxu0 0
    %692 = vmatpush1.bf16.msra.mxu0 0
    %693 = vmatprep.subr.bf16.mxu0 0
    %694 = vmatpush1.bf16.msra.mxu0 0
    %695 = vmatprep.subr.bf16.mxu0 0
    %696 = vmatpush1.bf16.msra.mxu0 0
    %697 = vmatprep.subr.bf16.mxu0 0
    %698 = vmatpush1.bf16.msra.mxu0 0
    %699 = vmatprep.subr.bf16.mxu0 0
    %700 = vmatpush1.bf16.msra.mxu0 0
    %701 = vmatprep.subr.bf16.mxu0 0
    %702 = vmatpush1.bf16.msra.mxu0 0
    %703 = vmatprep.subr.bf16.mxu0 0
    %704 = vmatpush1.bf16.msra.mxu0 %v515
    %705 = vmatprep.subr.bf16.mxu0 0
    %706 = vmatpush2.bf16.msra.mxu0 0
    %707 = vmatprep.subr.bf16.mxu0 0
    %708 = vmatpush2.bf16.msra.mxu0 0
    %709 = vmatprep.subr.bf16.mxu0 0
    %710 = vmatpush2.bf16.msra.mxu0 0
    %711 = vmatprep.subr.bf16.mxu0 0
    %712 = vmatpush2.bf16.msra.mxu0 0
    %713 = vmatprep.subr.bf16.mxu0 0
    %714 = vmatpush2.bf16.msra.mxu0 0
    %715 = vmatprep.subr.bf16.mxu0 0
    %716 = vmatpush2.bf16.msra.mxu0 0
    %717 = vmatprep.subr.bf16.mxu0 0
    %718 = vmatpush2.bf16.msra.mxu0 0
    %719 = vmatprep.subr.bf16.mxu0 0
    %720 = vmatpush2.bf16.msra.mxu0 0
    %721 = vmatprep.mubr.bf16.mxu0 0
    %722 = vmatmul.mubr.bf16.gmra.mxu0 %v567
    %v723 = vpop.f32.mrf.mxu0
    %v724 = vadd.f32 %v684, %v723
    %v725 = vpop.f32.mrf.mxu0
    %v726 = vpop.f32.mrf.mxu0
    %v727 = vpop.f32.mrf.mxu0
    %728 = vdwg.mxu0
    %v729 = vmul.f32 %v724, 0.5
    %v730 = vtanh.pop %v729
    %v731 = vadd.f32 %v730, 1.0
    %v732 = vmul.f32 %v731, 0.5
    %v733 = vld [vmem:[%s3] sm:$0xf]
    %v734 = vld [vmem:[%s3 + $0x4] sm:$0xf]
    %v735 = vld [vmem:[%s3 + $0x8] sm:$0xf]
    %v736 = vld [vmem:[%s3 + $0xc] sm:$0xf]
    %v737 = vld [vmem:[%s3 + $0x10] sm:$0xf]
    %v738 = vld [vmem:[%s3 + $0x14] sm:$0xf]
    %v739 = vld [vmem:[%s3 + $0x18] sm:$0xf]
    %v740 = vld [vmem:[%s3 + $0x1c] sm:$0xf]
    %v741 = vld [vmem:[%s3 + $0x20] sm:$0xf]
    %v742 = vld [vmem:[%s3 + $0x24] sm:$0xf]
    %v743 = vld [vmem:[%s3 + $0x28] sm:$0xf]
    %v744 = vld [vmem:[%s3 + $0x2c] sm:$0xf]
    %v745 = vld [vmem:[%s3 + $0x30] sm:$0xf]
    %v746 = vld [vmem:[%s3 + $0x34] sm:$0xf]
    %v747 = vld [vmem:[%s3 + $0x38] sm:$0xf]
    %v748 = vld [vmem:[%s3 + $0x3c] sm:$0xf]
    %v749 = vld [vmem:[%s4] sm:$0x1]
    %v750 = vpack.c.bf16 %v732, %v732
    %v752 = vlaneseq
    %v753 = vshrl.u32 %v752, 7
    %v754 = vsub.s32 0, %v753
    %v755 = vrot.slane %v749, %v754
    %v773 = vunpack.c.l.b16 %v733
    %v774 = vunpack.c.l.b16 %v734
    %v775 = vunpack.c.l.b16 %v735
    %v776 = vunpack.c.l.b16 %v736
    %v777 = vunpack.c.l.b16 %v737
    %v778 = vunpack.c.l.b16 %v738
    %v779 = vunpack.c.l.b16 %v739
    %v780 = vunpack.c.l.b16 %v740
    %v781 = vunpack.c.l.b16 %v741
    %v782 = vunpack.c.l.b16 %v742
    %v783 = vunpack.c.l.b16 %v743
    %v784 = vunpack.c.l.b16 %v744
    %v785 = vunpack.c.l.b16 %v745
    %v786 = vunpack.c.l.b16 %v746
    %v787 = vunpack.c.l.b16 %v747
    %v788 = vunpack.c.l.b16 %v748
    %v789 = vpack.c.b16 %v774, %v773
    %v790 = vpack.c.b16 %v776, %v775
    %v791 = vpack.c.b16 %v778, %v777
    %v792 = vpack.c.b16 %v780, %v779
    %v793 = vpack.c.b16 %v782, %v781
    %v794 = vpack.c.b16 %v784, %v783
    %v795 = vpack.c.b16 %v786, %v785
    %v796 = vpack.c.b16 %v788, %v787
    %805 = vmatprep.subr.bf16.mxu0 0
    %806 = vmatpush1.bf16.msra.mxu0 %v796
    %807 = vmatprep.subr.bf16.mxu0 0
    %808 = vmatpush1.bf16.msra.mxu0 %v795
    %809 = vmatprep.subr.bf16.mxu0 0
    %810 = vmatpush1.bf16.msra.mxu0 %v794
    %811 = vmatprep.subr.bf16.mxu0 0
    %812 = vmatpush1.bf16.msra.mxu0 %v793
    %813 = vmatprep.subr.bf16.mxu0 0
    %814 = vmatpush1.bf16.msra.mxu0 %v792
    %815 = vmatprep.subr.bf16.mxu0 0
    %816 = vmatpush1.bf16.msra.mxu0 %v791
    %817 = vmatprep.subr.bf16.mxu0 0
    %818 = vmatpush1.bf16.msra.mxu0 %v790
    %819 = vmatprep.subr.bf16.mxu0 0
    %820 = vmatpush1.bf16.msra.mxu0 %v789
    %821 = vmatprep.subr.bf16.mxu0 0
    %822 = vmatpush2.bf16.msra.mxu0 0
    %823 = vmatprep.subr.bf16.mxu0 0
    %824 = vmatpush2.bf16.msra.mxu0 0
    %825 = vmatprep.subr.bf16.mxu0 0
    %826 = vmatpush2.bf16.msra.mxu0 0
    %827 = vmatprep.subr.bf16.mxu0 0
    %828 = vmatpush2.bf16.msra.mxu0 0
    %829 = vmatprep.subr.bf16.mxu0 0
    %830 = vmatpush2.bf16.msra.mxu0 0
    %831 = vmatprep.subr.bf16.mxu0 0
    %832 = vmatpush2.bf16.msra.mxu0 0
    %833 = vmatprep.subr.bf16.mxu0 0
    %834 = vmatpush2.bf16.msra.mxu0 0
    %835 = vmatprep.subr.bf16.mxu0 0
    %836 = vmatpush2.bf16.msra.mxu0 0
    %837 = vmatprep.mubr.bf16.mxu0 0
    %838 = vmatmul.mubr.bf16.gmra.mxu0 %v750
    %v839 = vpop.f32.mrf.mxu0
    %v840 = vadd.f32 %v755, %v839
    %v841 = vpop.f32.mrf.mxu0
    %v842 = vpop.f32.mrf.mxu0
    %v843 = vpop.f32.mrf.mxu0
    %844 = vdwg.mxu0
    %v845 = vmul.f32 %v840, 0.5
    %v846 = vtanh.pop %v845
    %v847 = vadd.f32 %v846, 1.0
    %v848 = vmul.f32 %v847, 0.5
    %v849 = vld [vmem:[#allocation2] sm:$0xf]
    %v850 = vld [vmem:[#allocation2 + $0x4] sm:$0xf]
    %v851 = vld [vmem:[#allocation2 + $0x8] sm:$0xf]
    %v852 = vld [vmem:[#allocation2 + $0xc] sm:$0xf]
    %v853 = vld [vmem:[#allocation2 + $0x10] sm:$0xf]
    %v854 = vld [vmem:[#allocation2 + $0x14] sm:$0xf]
    %v855 = vld [vmem:[#allocation2 + $0x18] sm:$0xf]
    %v856 = vld [vmem:[#allocation2 + $0x1c] sm:$0xf]
    %v857 = vld [vmem:[#allocation2 + $0x20] sm:$0xf]
    %v858 = vld [vmem:[#allocation2 + $0x24] sm:$0xf]
    %v859 = vld [vmem:[#allocation2 + $0x28] sm:$0xf]
    %v860 = vld [vmem:[#allocation2 + $0x2c] sm:$0xf]
    %v861 = vld [vmem:[#allocation2 + $0x30] sm:$0xf]
    %v862 = vld [vmem:[#allocation2 + $0x34] sm:$0xf]
    %v863 = vld [vmem:[#allocation2 + $0x38] sm:$0xf]
    %v864 = vld [vmem:[#allocation2 + $0x3c] sm:$0xf]
    %v865 = vld [vmem:[%s6] sm:$0x1]
    %v866 = vpack.c.bf16 %v848, %v848
    %v868 = vlaneseq
    %v869 = vshrl.u32 %v868, 7
    %v870 = vsub.s32 0, %v869
    %v871 = vrot.slane %v865, %v870
    %v889 = vunpack.c.l.b16 %v849
    %v890 = vunpack.c.l.b16 %v850
    %v891 = vunpack.c.l.b16 %v851
    %v892 = vunpack.c.l.b16 %v852
    %v893 = vunpack.c.l.b16 %v853
    %v894 = vunpack.c.l.b16 %v854
    %v895 = vunpack.c.l.b16 %v855
    %v896 = vunpack.c.l.b16 %v856
    %v897 = vunpack.c.l.b16 %v857
    %v898 = vunpack.c.l.b16 %v858
    %v899 = vunpack.c.l.b16 %v859
    %v900 = vunpack.c.l.b16 %v860
    %v901 = vunpack.c.l.b16 %v861
    %v902 = vunpack.c.l.b16 %v862
    %v903 = vunpack.c.l.b16 %v863
    %v904 = vunpack.c.l.b16 %v864
    %v905 = vpack.c.b16 %v890, %v889
    %v906 = vpack.c.b16 %v892, %v891
    %v907 = vpack.c.b16 %v894, %v893
    %v908 = vpack.c.b16 %v896, %v895
    %v909 = vpack.c.b16 %v898, %v897
    %v910 = vpack.c.b16 %v900, %v899
    %v911 = vpack.c.b16 %v902, %v901
    %v912 = vpack.c.b16 %v904, %v903
    %921 = vmatprep.subr.bf16.mxu0 0
    %922 = vmatpush1.bf16.msra.mxu0 %v912
    %923 = vmatprep.subr.bf16.mxu0 0
    %924 = vmatpush1.bf16.msra.mxu0 %v911
    %925 = vmatprep.subr.bf16.mxu0 0
    %926 = vmatpush1.bf16.msra.mxu0 %v910
    %927 = vmatprep.subr.bf16.mxu0 0
    %928 = vmatpush1.bf16.msra.mxu0 %v909
    %929 = vmatprep.subr.bf16.mxu0 0
    %930 = vmatpush1.bf16.msra.mxu0 %v908
    %931 = vmatprep.subr.bf16.mxu0 0
    %932 = vmatpush1.bf16.msra.mxu0 %v907
    %933 = vmatprep.subr.bf16.mxu0 0
    %934 = vmatpush1.bf16.msra.mxu0 %v906
    %935 = vmatprep.subr.bf16.mxu0 0
    %936 = vmatpush1.bf16.msra.mxu0 %v905
    %937 = vmatprep.subr.bf16.mxu0 0
    %938 = vmatpush2.bf16.msra.mxu0 0
    %939 = vmatprep.subr.bf16.mxu0 0
    %940 = vmatpush2.bf16.msra.mxu0 0
    %941 = vmatprep.subr.bf16.mxu0 0
    %942 = vmatpush2.bf16.msra.mxu0 0
    %943 = vmatprep.subr.bf16.mxu0 0
    %944 = vmatpush2.bf16.msra.mxu0 0
    %945 = vmatprep.subr.bf16.mxu0 0
    %946 = vmatpush2.bf16.msra.mxu0 0
    %947 = vmatprep.subr.bf16.mxu0 0
    %948 = vmatpush2.bf16.msra.mxu0 0
    %949 = vmatprep.subr.bf16.mxu0 0
    %950 = vmatpush2.bf16.msra.mxu0 0
    %951 = vmatprep.subr.bf16.mxu0 0
    %952 = vmatpush2.bf16.msra.mxu0 0
    %953 = vmatprep.mubr.bf16.mxu0 0
    %954 = vmatmul.mubr.bf16.gmra.mxu0 %v866
    %v955 = vpop.f32.mrf.mxu0
    %v956 = vadd.f32 %v871, %v955
    %v957 = vpop.f32.mrf.mxu0
    %v958 = vpop.f32.mrf.mxu0
    %v959 = vpop.f32.mrf.mxu0
    %960 = vdwg.mxu0
    %v961 = vmul.f32 %v956, 0.5
    %v962 = vtanh.pop %v961
    %v963 = vadd.f32 %v962, 1.0
    %v964 = vmul.f32 %v963, 0.5
    %v965 = vld [vmem:[#allocation5] sm:$0xf]
    %v966 = vld [vmem:[#allocation5 + $0x4] sm:$0xf]
    %v967 = vld [vmem:[#allocation5 + $0x8] sm:$0xf]
    %v968 = vld [vmem:[#allocation5 + $0xc] sm:$0xf]
    %v969 = vld [vmem:[#allocation5 + $0x10] sm:$0xf]
    %v970 = vld [vmem:[#allocation5 + $0x14] sm:$0xf]
    %v971 = vld [vmem:[#allocation5 + $0x18] sm:$0xf]
    %v972 = vld [vmem:[#allocation5 + $0x1c] sm:$0xf]
    %v973 = vld [vmem:[#allocation5 + $0x20] sm:$0xf]
    %v974 = vld [vmem:[#allocation5 + $0x24] sm:$0xf]
    %v975 = vld [vmem:[#allocation5 + $0x28] sm:$0xf]
    %v976 = vld [vmem:[#allocation5 + $0x2c] sm:$0xf]
    %v977 = vld [vmem:[#allocation5 + $0x30] sm:$0xf]
    %v978 = vld [vmem:[#allocation5 + $0x34] sm:$0xf]
    %v979 = vld [vmem:[#allocation5 + $0x38] sm:$0xf]
    %v980 = vld [vmem:[#allocation5 + $0x3c] sm:$0xf]
    %v981 = vld [vmem:[%s8] sm:$0x1]
    %v982 = vpack.c.bf16 %v964, %v964
    %v984 = vlaneseq
    %v985 = vshrl.u32 %v984, 7
    %v986 = vsub.s32 0, %v985
    %v987 = vrot.slane %v981, %v986
    %v1005 = vunpack.c.l.b16 %v965
    %v1006 = vunpack.c.l.b16 %v966
    %v1007 = vunpack.c.l.b16 %v967
    %v1008 = vunpack.c.l.b16 %v968
    %v1009 = vunpack.c.l.b16 %v969
    %v1010 = vunpack.c.l.b16 %v970
    %v1011 = vunpack.c.l.b16 %v971
    %v1012 = vunpack.c.l.b16 %v972
    %v1013 = vunpack.c.l.b16 %v973
    %v1014 = vunpack.c.l.b16 %v974
    %v1015 = vunpack.c.l.b16 %v975
    %v1016 = vunpack.c.l.b16 %v976
    %v1017 = vunpack.c.l.b16 %v977
    %v1018 = vunpack.c.l.b16 %v978
    %v1019 = vunpack.c.l.b16 %v979
    %v1020 = vunpack.c.l.b16 %v980
    %v1021 = vpack.c.b16 %v1006, %v1005
    %v1022 = vpack.c.b16 %v1008, %v1007
    %v1023 = vpack.c.b16 %v1010, %v1009
    %v1024 = vpack.c.b16 %v1012, %v1011
    %v1025 = vpack.c.b16 %v1014, %v1013
    %v1026 = vpack.c.b16 %v1016, %v1015
    %v1027 = vpack.c.b16 %v1018, %v1017
    %v1028 = vpack.c.b16 %v1020, %v1019
    %1037 = vmatprep.subr.bf16.mxu0 0
    %1038 = vmatpush1.bf16.msra.mxu0 %v1028
    %1039 = vmatprep.subr.bf16.mxu0 0
    %1040 = vmatpush1.bf16.msra.mxu0 %v1027
    %1041 = vmatprep.subr.bf16.mxu0 0
    %1042 = vmatpush1.bf16.msra.mxu0 %v1026
    %1043 = vmatprep.subr.bf16.mxu0 0
    %1044 = vmatpush1.bf16.msra.mxu0 %v1025
    %1045 = vmatprep.subr.bf16.mxu0 0
    %1046 = vmatpush1.bf16.msra.mxu0 %v1024
    %1047 = vmatprep.subr.bf16.mxu0 0
    %1048 = vmatpush1.bf16.msra.mxu0 %v1023
    %1049 = vmatprep.subr.bf16.mxu0 0
    %1050 = vmatpush1.bf16.msra.mxu0 %v1022
    %1051 = vmatprep.subr.bf16.mxu0 0
    %1052 = vmatpush1.bf16.msra.mxu0 %v1021
    %1053 = vmatprep.subr.bf16.mxu0 0
    %1054 = vmatpush2.bf16.msra.mxu0 0
    %1055 = vmatprep.subr.bf16.mxu0 0
    %1056 = vmatpush2.bf16.msra.mxu0 0
    %1057 = vmatprep.subr.bf16.mxu0 0
    %1058 = vmatpush2.bf16.msra.mxu0 0
    %1059 = vmatprep.subr.bf16.mxu0 0
    %1060 = vmatpush2.bf16.msra.mxu0 0
    %1061 = vmatprep.subr.bf16.mxu0 0
    %1062 = vmatpush2.bf16.msra.mxu0 0
    %1063 = vmatprep.subr.bf16.mxu0 0
    %1064 = vmatpush2.bf16.msra.mxu0 0
    %1065 = vmatprep.subr.bf16.mxu0 0
    %1066 = vmatpush2.bf16.msra.mxu0 0
    %1067 = vmatprep.subr.bf16.mxu0 0
    %1068 = vmatpush2.bf16.msra.mxu0 0
    %1069 = vmatprep.mubr.bf16.mxu0 0
    %1070 = vmatmul.mubr.bf16.gmra.mxu0 %v982
    %v1071 = vpop.f32.mrf.mxu0
    %v1072 = vadd.f32 %v987, %v1071
    %v1073 = vpop.f32.mrf.mxu0
    %v1074 = vpop.f32.mrf.mxu0
    %v1075 = vpop.f32.mrf.mxu0
    %1076 = vdwg.mxu0
    %v1077 = vmul.f32 %v1072, 0.5
    %v1078 = vtanh.pop %v1077
    %v1079 = vadd.f32 %v1078, 1.0
    %v1080 = vmul.f32 %v1079, 0.5
    %v1081 = vld [vmem:[%s9] sm:$0xf]
    %v1082 = vld [vmem:[%s9 + $0x4] sm:$0xf]
    %v1083 = vld [vmem:[%s9 + $0x8] sm:$0xf]
    %v1084 = vld [vmem:[%s9 + $0xc] sm:$0xf]
    %v1085 = vld [vmem:[%s9 + $0x10] sm:$0xf]
    %v1086 = vld [vmem:[%s9 + $0x14] sm:$0xf]
    %v1087 = vld [vmem:[%s9 + $0x18] sm:$0xf]
    %v1088 = vld [vmem:[%s9 + $0x1c] sm:$0xf]
    %v1089 = vld [vmem:[%s9 + $0x20] sm:$0xf]
    %v1090 = vld [vmem:[%s9 + $0x24] sm:$0xf]
    %v1091 = vld [vmem:[%s9 + $0x28] sm:$0xf]
    %v1092 = vld [vmem:[%s9 + $0x2c] sm:$0xf]
    %v1093 = vld [vmem:[%s9 + $0x30] sm:$0xf]
    %v1094 = vld [vmem:[%s9 + $0x34] sm:$0xf]
    %v1095 = vld [vmem:[%s9 + $0x38] sm:$0xf]
    %v1096 = vld [vmem:[%s9 + $0x3c] sm:$0xf]
    %v1097 = vld [vmem:[#allocation7] sm:$0x1]
    %v1098 = vpack.c.bf16 %v1080, %v1080
    %v1100 = vlaneseq
    %v1101 = vshrl.u32 %v1100, 7
    %v1102 = vsub.s32 0, %v1101
    %v1103 = vrot.slane %v1097, %v1102
    %v1121 = vunpack.c.l.b16 %v1081
    %v1122 = vunpack.c.l.b16 %v1082
    %v1123 = vunpack.c.l.b16 %v1083
    %v1124 = vunpack.c.l.b16 %v1084
    %v1125 = vunpack.c.l.b16 %v1085
    %v1126 = vunpack.c.l.b16 %v1086
    %v1127 = vunpack.c.l.b16 %v1087
    %v1128 = vunpack.c.l.b16 %v1088
    %v1129 = vunpack.c.l.b16 %v1089
    %v1130 = vunpack.c.l.b16 %v1090
    %v1131 = vunpack.c.l.b16 %v1091
    %v1132 = vunpack.c.l.b16 %v1092
    %v1133 = vunpack.c.l.b16 %v1093
    %v1134 = vunpack.c.l.b16 %v1094
    %v1135 = vunpack.c.l.b16 %v1095
    %v1136 = vunpack.c.l.b16 %v1096
    %v1137 = vpack.c.b16 %v1122, %v1121
    %v1138 = vpack.c.b16 %v1124, %v1123
    %v1139 = vpack.c.b16 %v1126, %v1125
    %v1140 = vpack.c.b16 %v1128, %v1127
    %v1141 = vpack.c.b16 %v1130, %v1129
    %v1142 = vpack.c.b16 %v1132, %v1131
    %v1143 = vpack.c.b16 %v1134, %v1133
    %v1144 = vpack.c.b16 %v1136, %v1135
    %1153 = vmatprep.subr.bf16.mxu0 0
    %1154 = vmatpush1.bf16.msra.mxu0 %v1144
    %1155 = vmatprep.subr.bf16.mxu0 0
    %1156 = vmatpush1.bf16.msra.mxu0 %v1143
    %1157 = vmatprep.subr.bf16.mxu0 0
    %1158 = vmatpush1.bf16.msra.mxu0 %v1142
    %1159 = vmatprep.subr.bf16.mxu0 0
    %1160 = vmatpush1.bf16.msra.mxu0 %v1141
    %1161 = vmatprep.subr.bf16.mxu0 0
    %1162 = vmatpush1.bf16.msra.mxu0 %v1140
    %1163 = vmatprep.subr.bf16.mxu0 0
    %1164 = vmatpush1.bf16.msra.mxu0 %v1139
    %1165 = vmatprep.subr.bf16.mxu0 0
    %1166 = vmatpush1.bf16.msra.mxu0 %v1138
    %1167 = vmatprep.subr.bf16.mxu0 0
    %1168 = vmatpush1.bf16.msra.mxu0 %v1137
    %1169 = vmatprep.subr.bf16.mxu0 0
    %1170 = vmatpush2.bf16.msra.mxu0 0
    %1171 = vmatprep.subr.bf16.mxu0 0
    %1172 = vmatpush2.bf16.msra.mxu0 0
    %1173 = vmatprep.subr.bf16.mxu0 0
    %1174 = vmatpush2.bf16.msra.mxu0 0
    %1175 = vmatprep.subr.bf16.mxu0 0
    %1176 = vmatpush2.bf16.msra.mxu0 0
    %1177 = vmatprep.subr.bf16.mxu0 0
    %1178 = vmatpush2.bf16.msra.mxu0 0
    %1179 = vmatprep.subr.bf16.mxu0 0
    %1180 = vmatpush2.bf16.msra.mxu0 0
    %1181 = vmatprep.subr.bf16.mxu0 0
    %1182 = vmatpush2.bf16.msra.mxu0 0
    %1183 = vmatprep.subr.bf16.mxu0 0
    %1184 = vmatpush2.bf16.msra.mxu0 0
    %1185 = vmatprep.mubr.bf16.mxu0 0
    %1186 = vmatmul.mubr.bf16.gmra.mxu0 %v1098
    %v1187 = vpop.f32.mrf.mxu0
    %v1188 = vadd.f32 %v1103, %v1187
    %v1189 = vpop.f32.mrf.mxu0
    %v1190 = vpop.f32.mrf.mxu0
    %v1191 = vpop.f32.mrf.mxu0
    %1192 = vdwg.mxu0
    %v1193 = vmul.f32 %v1188, 0.5
    %v1194 = vtanh.pop %v1193
    %v1195 = vadd.f32 %v1194, 1.0
    %v1196 = vmul.f32 %v1195, 0.5
    %v1197 = vld [vmem:[#allocation8] sm:$0xf]
    %v1198 = vld [vmem:[#allocation8 + $0x4] sm:$0xf]
    %v1199 = vld [vmem:[#allocation8 + $0x8] sm:$0xf]
    %v1200 = vld [vmem:[#allocation8 + $0xc] sm:$0xf]
    %v1201 = vld [vmem:[#allocation8 + $0x10] sm:$0xf]
    %v1202 = vld [vmem:[#allocation8 + $0x14] sm:$0xf]
    %v1203 = vld [vmem:[#allocation8 + $0x18] sm:$0xf]
    %v1204 = vld [vmem:[#allocation8 + $0x1c] sm:$0xf]
    %v1205 = vld [vmem:[#allocation8 + $0x20] sm:$0xf]
    %v1206 = vld [vmem:[#allocation8 + $0x24] sm:$0xf]
    %v1207 = vld [vmem:[#allocation8 + $0x28] sm:$0xf]
    %v1208 = vld [vmem:[#allocation8 + $0x2c] sm:$0xf]
    %v1209 = vld [vmem:[#allocation8 + $0x30] sm:$0xf]
    %v1210 = vld [vmem:[#allocation8 + $0x34] sm:$0xf]
    %v1211 = vld [vmem:[#allocation8 + $0x38] sm:$0xf]
    %v1212 = vld [vmem:[#allocation8 + $0x3c] sm:$0xf]
    %v1213 = vld [vmem:[%s12] sm:$0x1]
    %v1214 = vpack.c.bf16 %v1196, %v1196
    %v1216 = vlaneseq
    %v1217 = vshrl.u32 %v1216, 7
    %v1218 = vsub.s32 0, %v1217
    %v1219 = vrot.slane %v1213, %v1218
    %v1237 = vunpack.c.l.b16 %v1197
    %v1238 = vunpack.c.l.b16 %v1198
    %v1239 = vunpack.c.l.b16 %v1199
    %v1240 = vunpack.c.l.b16 %v1200
    %v1241 = vunpack.c.l.b16 %v1201
    %v1242 = vunpack.c.l.b16 %v1202
    %v1243 = vunpack.c.l.b16 %v1203
    %v1244 = vunpack.c.l.b16 %v1204
    %v1245 = vunpack.c.l.b16 %v1205
    %v1246 = vunpack.c.l.b16 %v1206
    %v1247 = vunpack.c.l.b16 %v1207
    %v1248 = vunpack.c.l.b16 %v1208
    %v1249 = vunpack.c.l.b16 %v1209
    %v1250 = vunpack.c.l.b16 %v1210
    %v1251 = vunpack.c.l.b16 %v1211
    %v1252 = vunpack.c.l.b16 %v1212
    %v1253 = vpack.c.b16 %v1238, %v1237
    %v1254 = vpack.c.b16 %v1240, %v1239
    %v1255 = vpack.c.b16 %v1242, %v1241
    %v1256 = vpack.c.b16 %v1244, %v1243
    %v1257 = vpack.c.b16 %v1246, %v1245
    %v1258 = vpack.c.b16 %v1248, %v1247
    %v1259 = vpack.c.b16 %v1250, %v1249
    %v1260 = vpack.c.b16 %v1252, %v1251
    %1269 = vmatprep.subr.bf16.mxu0 0
    %1270 = vmatpush1.bf16.msra.mxu0 %v1260
    %1271 = vmatprep.subr.bf16.mxu0 0
    %1272 = vmatpush1.bf16.msra.mxu0 %v1259
    %1273 = vmatprep.subr.bf16.mxu0 0
    %1274 = vmatpush1.bf16.msra.mxu0 %v1258
    %1275 = vmatprep.subr.bf16.mxu0 0
    %1276 = vmatpush1.bf16.msra.mxu0 %v1257
    %1277 = vmatprep.subr.bf16.mxu0 0
    %1278 = vmatpush1.bf16.msra.mxu0 %v1256
    %1279 = vmatprep.subr.bf16.mxu0 0
    %1280 = vmatpush1.bf16.msra.mxu0 %v1255
    %1281 = vmatprep.subr.bf16.mxu0 0
    %1282 = vmatpush1.bf16.msra.mxu0 %v1254
    %1283 = vmatprep.subr.bf16.mxu0 0
    %1284 = vmatpush1.bf16.msra.mxu0 %v1253
    %1285 = vmatprep.subr.bf16.mxu0 0
    %1286 = vmatpush2.bf16.msra.mxu0 0
    %1287 = vmatprep.subr.bf16.mxu0 0
    %1288 = vmatpush2.bf16.msra.mxu0 0
    %1289 = vmatprep.subr.bf16.mxu0 0
    %1290 = vmatpush2.bf16.msra.mxu0 0
    %1291 = vmatprep.subr.bf16.mxu0 0
    %1292 = vmatpush2.bf16.msra.mxu0 0
    %1293 = vmatprep.subr.bf16.mxu0 0
    %1294 = vmatpush2.bf16.msra.mxu0 0
    %1295 = vmatprep.subr.bf16.mxu0 0
    %1296 = vmatpush2.bf16.msra.mxu0 0
    %1297 = vmatprep.subr.bf16.mxu0 0
    %1298 = vmatpush2.bf16.msra.mxu0 0
    %1299 = vmatprep.subr.bf16.mxu0 0
    %1300 = vmatpush2.bf16.msra.mxu0 0
    %1301 = vmatprep.mubr.bf16.mxu0 0
    %1302 = vmatmul.mubr.bf16.gmra.mxu0 %v1214
    %v1303 = vpop.f32.mrf.mxu0
    %v1304 = vadd.f32 %v1219, %v1303
    %v1305 = vpop.f32.mrf.mxu0
    %v1306 = vpop.f32.mrf.mxu0
    %v1307 = vpop.f32.mrf.mxu0
    %1308 = vdwg.mxu0
    %v1309 = vmul.f32 %v1304, 0.5
    %v1310 = vtanh.pop %v1309
    %v1311 = vadd.f32 %v1310, 1.0
    %v1312 = vmul.f32 %v1311, 0.5
    %v1313 = vld [vmem:[#allocation10] sm:$0xf]
    %v1314 = vld [vmem:[#allocation10 + $0x4] sm:$0xf]
    %v1315 = vld [vmem:[#allocation10 + $0x8] sm:$0xf]
    %v1316 = vld [vmem:[#allocation10 + $0xc] sm:$0xf]
    %v1317 = vld [vmem:[#allocation10 + $0x10] sm:$0xf]
    %v1318 = vld [vmem:[#allocation10 + $0x14] sm:$0xf]
    %v1319 = vld [vmem:[#allocation10 + $0x18] sm:$0xf]
    %v1320 = vld [vmem:[#allocation10 + $0x1c] sm:$0xf]
    %v1321 = vld [vmem:[#allocation10 + $0x20] sm:$0xf]
    %v1322 = vld [vmem:[#allocation10 + $0x24] sm:$0xf]
    %v1323 = vld [vmem:[#allocation10 + $0x28] sm:$0xf]
    %v1324 = vld [vmem:[#allocation10 + $0x2c] sm:$0xf]
    %v1325 = vld [vmem:[#allocation10 + $0x30] sm:$0xf]
    %v1326 = vld [vmem:[#allocation10 + $0x34] sm:$0xf]
    %v1327 = vld [vmem:[#allocation10 + $0x38] sm:$0xf]
    %v1328 = vld [vmem:[#allocation10 + $0x3c] sm:$0xf]
    %v1329 = vld [vmem:[%s14] sm:$0x1]
    %v1330 = vpack.c.bf16 %v1312, %v1312
    %v1332 = vlaneseq
    %v1333 = vshrl.u32 %v1332, 7
    %v1334 = vsub.s32 0, %v1333
    %v1335 = vrot.slane %v1329, %v1334
    %v1353 = vunpack.c.l.b16 %v1313
    %v1354 = vunpack.c.l.b16 %v1314
    %v1355 = vunpack.c.l.b16 %v1315
    %v1356 = vunpack.c.l.b16 %v1316
    %v1357 = vunpack.c.l.b16 %v1317
    %v1358 = vunpack.c.l.b16 %v1318
    %v1359 = vunpack.c.l.b16 %v1319
    %v1360 = vunpack.c.l.b16 %v1320
    %v1361 = vunpack.c.l.b16 %v1321
    %v1362 = vunpack.c.l.b16 %v1322
    %v1363 = vunpack.c.l.b16 %v1323
    %v1364 = vunpack.c.l.b16 %v1324
    %v1365 = vunpack.c.l.b16 %v1325
    %v1366 = vunpack.c.l.b16 %v1326
    %v1367 = vunpack.c.l.b16 %v1327
    %v1368 = vunpack.c.l.b16 %v1328
    %v1369 = vpack.c.b16 %v1354, %v1353
    %v1370 = vpack.c.b16 %v1356, %v1355
    %v1371 = vpack.c.b16 %v1358, %v1357
    %v1372 = vpack.c.b16 %v1360, %v1359
    %v1373 = vpack.c.b16 %v1362, %v1361
    %v1374 = vpack.c.b16 %v1364, %v1363
    %v1375 = vpack.c.b16 %v1366, %v1365
    %v1376 = vpack.c.b16 %v1368, %v1367
    %1385 = vmatprep.subr.bf16.mxu0 0
    %1386 = vmatpush1.bf16.msra.mxu0 %v1376
    %1387 = vmatprep.subr.bf16.mxu0 0
    %1388 = vmatpush1.bf16.msra.mxu0 %v1375
    %1389 = vmatprep.subr.bf16.mxu0 0
    %1390 = vmatpush1.bf16.msra.mxu0 %v1374
    %1391 = vmatprep.subr.bf16.mxu0 0
    %1392 = vmatpush1.bf16.msra.mxu0 %v1373
    %1393 = vmatprep.subr.bf16.mxu0 0
    %1394 = vmatpush1.bf16.msra.mxu0 %v1372
    %1395 = vmatprep.subr.bf16.mxu0 0
    %1396 = vmatpush1.bf16.msra.mxu0 %v1371
    %1397 = vmatprep.subr.bf16.mxu0 0
    %1398 = vmatpush1.bf16.msra.mxu0 %v1370
    %1399 = vmatprep.subr.bf16.mxu0 0
    %1400 = vmatpush1.bf16.msra.mxu0 %v1369
    %1401 = vmatprep.subr.bf16.mxu0 0
    %1402 = vmatpush2.bf16.msra.mxu0 0
    %1403 = vmatprep.subr.bf16.mxu0 0
    %1404 = vmatpush2.bf16.msra.mxu0 0
    %1405 = vmatprep.subr.bf16.mxu0 0
    %1406 = vmatpush2.bf16.msra.mxu0 0
    %1407 = vmatprep.subr.bf16.mxu0 0
    %1408 = vmatpush2.bf16.msra.mxu0 0
    %1409 = vmatprep.subr.bf16.mxu0 0
    %1410 = vmatpush2.bf16.msra.mxu0 0
    %1411 = vmatprep.subr.bf16.mxu0 0
    %1412 = vmatpush2.bf16.msra.mxu0 0
    %1413 = vmatprep.subr.bf16.mxu0 0
    %1414 = vmatpush2.bf16.msra.mxu0 0
    %1415 = vmatprep.subr.bf16.mxu0 0
    %1416 = vmatpush2.bf16.msra.mxu0 0
    %1417 = vmatprep.mubr.bf16.mxu0 0
    %1418 = vmatmul.mubr.bf16.gmra.mxu0 %v1330
    %v1419 = vpop.f32.mrf.mxu0
    %v1420 = vadd.f32 %v1335, %v1419
    %v1421 = vpop.f32.mrf.mxu0
    %v1422 = vpop.f32.mrf.mxu0
    %v1423 = vpop.f32.mrf.mxu0
    %1424 = vdwg.mxu0
    %v1425 = vmul.f32 %v1420, 0.5
    %v1426 = vtanh.pop %v1425
    %v1427 = vadd.f32 %v1426, 1.0
    %v1428 = vmul.f32 %v1427, 0.5
    %v1429 = vld [vmem:[#allocation11] sm:$0xf]
    %v1430 = vld [vmem:[#allocation11 + $0x4] sm:$0xf]
    %v1431 = vld [vmem:[#allocation11 + $0x8] sm:$0xf]
    %v1432 = vld [vmem:[#allocation11 + $0xc] sm:$0xf]
    %v1433 = vld [vmem:[#allocation11 + $0x10] sm:$0xf]
    %v1434 = vld [vmem:[#allocation11 + $0x14] sm:$0xf]
    %v1435 = vld [vmem:[#allocation11 + $0x18] sm:$0xf]
    %v1436 = vld [vmem:[#allocation11 + $0x1c] sm:$0xf]
    %v1437 = vld [vmem:[#allocation11 + $0x20] sm:$0xf]
    %v1438 = vld [vmem:[#allocation11 + $0x24] sm:$0xf]
    %v1439 = vld [vmem:[#allocation11 + $0x28] sm:$0xf]
    %v1440 = vld [vmem:[#allocation11 + $0x2c] sm:$0xf]
    %v1441 = vld [vmem:[#allocation11 + $0x30] sm:$0xf]
    %v1442 = vld [vmem:[#allocation11 + $0x34] sm:$0xf]
    %v1443 = vld [vmem:[#allocation11 + $0x38] sm:$0xf]
    %v1444 = vld [vmem:[#allocation11 + $0x3c] sm:$0xf]
    %v1445 = vld [vmem:[%s16] sm:$0x1]
    %v1446 = vpack.c.bf16 %v1428, %v1428
    %v1448 = vlaneseq
    %v1449 = vshrl.u32 %v1448, 7
    %v1450 = vsub.s32 0, %v1449
    %v1451 = vrot.slane %v1445, %v1450
    %v1469 = vunpack.c.l.b16 %v1429
    %v1470 = vunpack.c.l.b16 %v1430
    %v1471 = vunpack.c.l.b16 %v1431
    %v1472 = vunpack.c.l.b16 %v1432
    %v1473 = vunpack.c.l.b16 %v1433
    %v1474 = vunpack.c.l.b16 %v1434
    %v1475 = vunpack.c.l.b16 %v1435
    %v1476 = vunpack.c.l.b16 %v1436
    %v1477 = vunpack.c.l.b16 %v1437
    %v1478 = vunpack.c.l.b16 %v1438
    %v1479 = vunpack.c.l.b16 %v1439
    %v1480 = vunpack.c.l.b16 %v1440
    %v1481 = vunpack.c.l.b16 %v1441
    %v1482 = vunpack.c.l.b16 %v1442
    %v1483 = vunpack.c.l.b16 %v1443
    %v1484 = vunpack.c.l.b16 %v1444
    %v1485 = vpack.c.b16 %v1470, %v1469
    %v1486 = vpack.c.b16 %v1472, %v1471
    %v1487 = vpack.c.b16 %v1474, %v1473
    %v1488 = vpack.c.b16 %v1476, %v1475
    %v1489 = vpack.c.b16 %v1478, %v1477
    %v1490 = vpack.c.b16 %v1480, %v1479
    %v1491 = vpack.c.b16 %v1482, %v1481
    %v1492 = vpack.c.b16 %v1484, %v1483
    %1501 = vmatprep.subr.bf16.mxu0 0
    %1502 = vmatpush1.bf16.msra.mxu0 %v1492
    %1503 = vmatprep.subr.bf16.mxu0 0
    %1504 = vmatpush1.bf16.msra.mxu0 %v1491
    %1505 = vmatprep.subr.bf16.mxu0 0
    %1506 = vmatpush1.bf16.msra.mxu0 %v1490
    %1507 = vmatprep.subr.bf16.mxu0 0
    %1508 = vmatpush1.bf16.msra.mxu0 %v1489
    %1509 = vmatprep.subr.bf16.mxu0 0
    %1510 = vmatpush1.bf16.msra.mxu0 %v1488
    %1511 = vmatprep.subr.bf16.mxu0 0
    %1512 = vmatpush1.bf16.msra.mxu0 %v1487
    %1513 = vmatprep.subr.bf16.mxu0 0
    %1514 = vmatpush1.bf16.msra.mxu0 %v1486
    %1515 = vmatprep.subr.bf16.mxu0 0
    %1516 = vmatpush1.bf16.msra.mxu0 %v1485
    %1517 = vmatprep.subr.bf16.mxu0 0
    %1518 = vmatpush2.bf16.msra.mxu0 0
    %1519 = vmatprep.subr.bf16.mxu0 0
    %1520 = vmatpush2.bf16.msra.mxu0 0
    %1521 = vmatprep.subr.bf16.mxu0 0
    %1522 = vmatpush2.bf16.msra.mxu0 0
    %1523 = vmatprep.subr.bf16.mxu0 0
    %1524 = vmatpush2.bf16.msra.mxu0 0
    %1525 = vmatprep.subr.bf16.mxu0 0
    %1526 = vmatpush2.bf16.msra.mxu0 0
    %1527 = vmatprep.subr.bf16.mxu0 0
    %1528 = vmatpush2.bf16.msra.mxu0 0
    %1529 = vmatprep.subr.bf16.mxu0 0
    %1530 = vmatpush2.bf16.msra.mxu0 0
    %1531 = vmatprep.subr.bf16.mxu0 0
    %1532 = vmatpush2.bf16.msra.mxu0 0
    %1533 = vmatprep.mubr.bf16.mxu0 0
    %1534 = vmatmul.mubr.bf16.gmra.mxu0 %v1446
    %v1535 = vpop.f32.mrf.mxu0
    %v1536 = vadd.f32 %v1451, %v1535
    %v1537 = vpop.f32.mrf.mxu0
    %v1538 = vpop.f32.mrf.mxu0
    %v1539 = vpop.f32.mrf.mxu0
    %1540 = vdwg.mxu0
    %1541 = vst [vmem:[#allocation13] sm:$0xff] %v1536
    // Predicated region
    $region94: #{mlp_forward.1} parent=1 // pred_check
      _
    $region95: #{mlp_forward.1} parent=1 // pred_check_branch
      %1543 = sbr.rel (0) target = $region97
    $region96: #{mlp_forward.1} parent=1 // pred_region
      %s1545 = ssub.s32 128, 128
      %1546 = vsyncadd [#allocation4], %s1545
      %s1548 = sshll.u32 [#allocation13], 4
      %s1549 = int_to_ptr.vmem [resolvable:$true] %s1548
      %1551 = dma.vmem_to_hbm [thread:$0]  %s1549, 128, %s17, [#allocation4]
    $region97: #{mlp_forward.1} parent=1 // pred_fallthru
      _
    // Predicated region
    $region98: #{mlp_forward.1} parent=1 // pred_check
      _
    $region99: #{mlp_forward.1} parent=1 // pred_check_branch
      %1553 = sbr.rel (0) target = $region101
    $region100: #{mlp_forward.1} parent=1 // pred_region
      %1554 = dma.done [#allocation4], 128
    $region101: #{mlp_forward.1} parent=1 // pred_fallthru
      _
    %1555 = vsyncpa [#allocation3], 1
    %1556 = vsyncpa [#allocation6], 1
    %1557 = vsyncpa [#allocation9], 1
    %1558 = vsyncpa [#allocation12], 1
    %1559 = vsyncpa [#allocation4], 1

</llo_original>
